<compile_context>
chip_gen: v6e
topology: v6e:2x2x1
jax: 0.10.0
libtpu: 0.0.40
codegen_flags: <defaults>
</compile_context>

<pallas_src>
import jax
import jax.numpy as jnp
from jax.experimental import pallas as pl
from jax.experimental.pallas import tpu as pltpu


def _conv_row_matrices(w_hwio, width):
    """Fold the 3 horizontal taps + horizontal zero padding of a 3x3 conv into
    three block-Toeplitz matrices.

    w_hwio: (3, 3, Cin, Cout).  Returns M of shape (3, width*Cin, width*Cout)
    with  M[dy, xin*Cin + ci, xout*Cout + co] = w_hwio[dy, xin - xout + 1, ci, co]
    when |xin - xout| <= 1, else 0.
    """
    _, _, c_in, c_out = w_hwio.shape
    xin = jnp.arange(width)[:, None]
    xout = jnp.arange(width)[None, :]
    dx = xin - xout + 1                               # kernel column index
    valid = ((dx >= 0) & (dx <= 2)).astype(w_hwio.dtype)
    dx_c = jnp.clip(dx, 0, 2)
    m = w_hwio[:, dx_c, :, :]                         # (3, W, W, Cin, Cout)
    m = m * valid[None, :, :, None, None]
    m = jnp.transpose(m, (0, 1, 3, 2, 4))             # (3, W, Cin, W, Cout)
    return m.reshape(3, width * c_in, width * c_out)


def _resblock_kernel(xpad_ref, m1_ref, b1_ref, m2_ref, b2_ref, o_ref, hpad_ref):
    # xpad_ref: (1, H+2, W*C)  vertically zero-padded input rows (lane-dense)
    # m*_ref:   (3, W*C, W*C)  block-Toeplitz conv weights (one per kernel row)
    # b*_ref:   (1, W*C)       bias pre-tiled across W
    # o_ref:    (1, H, W*C)
    # hpad_ref: (H+2, W*C)     VMEM scratch: vertically padded conv2 input
    H = o_ref.shape[1]
    WC = o_ref.shape[2]
    dn = (((1,), (0,)), ((), ()))

    xpad = xpad_ref[0]                                # (H+2, WC)

    # ---------------- conv1: 3 lane-dense MXU matmuls + bias + ReLU ----------
    acc = jax.lax.dot_general(xpad[0:H, :], m1_ref[0], dn,
                              preferred_element_type=jnp.float32)
    for dy in (1, 2):
        acc += jax.lax.dot_general(xpad[dy:dy + H, :], m1_ref[dy], dn,
                                   preferred_element_type=jnp.float32)
    h = jnp.maximum(acc + b1_ref[...], 0.0)           # (H, WC)

    # ---------------- conv2: stage h with vertical pad (zero border rows only)
    zero_row = jnp.zeros((1, WC), jnp.float32)
    hpad_ref[pl.ds(0, 1), :] = zero_row
    hpad_ref[pl.ds(H + 1, 1), :] = zero_row
    hpad_ref[pl.ds(1, H), :] = h

    acc2 = jax.lax.dot_general(hpad_ref[pl.ds(0, H), :], m2_ref[0], dn,
                               preferred_element_type=jnp.float32)
    for dy in (1, 2):
        acc2 += jax.lax.dot_general(hpad_ref[pl.ds(dy, H), :], m2_ref[dy], dn,
                                    preferred_element_type=jnp.float32)
    acc2 += b2_ref[...]

    # ---------------- residual add (interior rows of xpad are the original x)
    o_ref[0] = (xpad[1:H + 1, :] + acc2).astype(o_ref.dtype)


def resblock_pallas_nchw(x_nchw, w1_oihw, b1, w2_oihw, b2):
    """PyTorch-semantics ResBlock forward (NCHW in -> NCHW out)."""
    N, C, H, W = x_nchw.shape
    WC = W * C

    # Lane-dense activation layout: (N, H, W*C), vertically zero-padded rows.
    x_rows = jnp.transpose(x_nchw, (0, 2, 3, 1)).reshape(N, H, WC)
    x_pad = jnp.pad(x_rows, ((0, 0), (1, 1), (0, 0)))            # (N, H+2, WC)

    w1_hwio = jnp.transpose(w1_oihw, (2, 3, 1, 0))
    w2_hwio = jnp.transpose(w2_oihw, (2, 3, 1, 0))
    m1 = _conv_row_matrices(w1_hwio, W).astype(jnp.float32)       # (3, WC, WC)
    m2 = _conv_row_matrices(w2_hwio, W).astype(jnp.float32)
    b1_row = jnp.tile(b1, W).reshape(1, WC).astype(jnp.float32)
    b2_row = jnp.tile(b2, W).reshape(1, WC).astype(jnp.float32)

    y_rows = pl.pallas_call(
        _resblock_kernel,
        out_shape=jax.ShapeDtypeStruct((N, H, WC), x_nchw.dtype),
        grid_spec=pltpu.PrefetchScalarGridSpec(
            num_scalar_prefetch=0,
            grid=(N,),
            in_specs=[
                pl.BlockSpec((1, H + 2, WC), lambda n: (n, 0, 0)),
                pl.BlockSpec((3, WC, WC), lambda n: (0, 0, 0)),
                pl.BlockSpec((1, WC), lambda n: (0, 0)),
                pl.BlockSpec((3, WC, WC), lambda n: (0, 0, 0)),
                pl.BlockSpec((1, WC), lambda n: (0, 0)),
            ],
            out_specs=pl.BlockSpec((1, H, WC), lambda n: (n, 0, 0)),
            scratch_shapes=[pltpu.VMEM((H + 2, WC), jnp.float32)],
        ),
        compiler_params=pltpu.CompilerParams(
            dimension_semantics=("parallel",)),
    )(x_pad, m1, b1_row, m2, b2_row)

    return jnp.transpose(y_rows.reshape(N, H, W, C), (0, 3, 1, 2))


def resblock_reference_nhwc(x, w1_hwio, b1, w2_hwio, b2):
    dn = jax.lax.conv_dimension_numbers(x.shape, w1_hwio.shape,
                                        ('NHWC', 'HWIO', 'NHWC'))
    out = jax.lax.conv_general_dilated(x, w1_hwio, (1, 1), 'SAME',
                                       dimension_numbers=dn) + b1
    out = jnp.maximum(out, 0.0)
    out = jax.lax.conv_general_dilated(out, w2_hwio, (1, 1), 'SAME',
                                       dimension_numbers=dn) + b2
    return x + out


if __name__ == "__main__":
    internal_channel = 16   # matches ResBlock(internal_channel=16)
    N, H, W = 2, 16, 16

    key = jax.random.PRNGKey(0)
    k_x, k_w1, k_b1, k_w2, k_b2 = jax.random.split(key, 5)

    # PyTorch-convention shapes: x NCHW, conv weight OIHW, bias (C,)
    x_nchw = jax.random.normal(k_x, (N, internal_channel, H, W), jnp.float32)
    w1 = jax.random.normal(k_w1, (internal_channel, internal_channel, 3, 3),
                           jnp.float32) * 0.1
    b1 = jax.random.normal(k_b1, (internal_channel,), jnp.float32) * 0.1
    w2 = jax.random.normal(k_w2, (internal_channel, internal_channel, 3, 3),
                           jnp.float32) * 0.1
    b2 = jax.random.normal(k_b2, (internal_channel,), jnp.float32) * 0.1

    y = resblock_pallas_nchw(x_nchw, w1, b1, w2, b2)
    y = jax.block_until_ready(y)

    # Cross-check against a pure-JAX reference of the same forward pass.
    x_nhwc = jnp.transpose(x_nchw, (0, 2, 3, 1))
    w1_hwio = jnp.transpose(w1, (2, 3, 1, 0))
    w2_hwio = jnp.transpose(w2, (2, 3, 1, 0))
    y_ref = jnp.transpose(
        resblock_reference_nhwc(x_nhwc, w1_hwio, b1, w2_hwio, b2),
        (0, 3, 1, 2))
    assert y.shape == x_nchw.shape and y.dtype == x_nchw.dtype
    assert jnp.allclose(y, y_ref, atol=2e-4, rtol=2e-4), \
        f"max err {jnp.max(jnp.abs(y - y_ref))}"

    print("KERNEL_OK")
</pallas_src>

<mosaic_0001>
module attributes {stable_mosaic.version = 11 : i64} {
  func.func @_resblock_kernel(%arg0: i32, %arg1: memref<1x18x256xf32, #tpu.memory_space<vmem>>, %arg2: memref<3x256x256xf32, #tpu.memory_space<vmem>>, %arg3: memref<1x256xf32, #tpu.memory_space<vmem>>, %arg4: memref<3x256x256xf32, #tpu.memory_space<vmem>>, %arg5: memref<1x256xf32, #tpu.memory_space<vmem>>, %arg6: memref<1x16x256xf32, #tpu.memory_space<vmem>>, %arg7: memref<18x256xf32, #tpu.memory_space<vmem>>) attributes {dimension_semantics = [#tpu.dimension_semantics<parallel>], iteration_bounds = array<i64: 2>, scalar_prefetch = 0 : i64, scratch_operands = 1 : i64, tpu.core_type = #tpu.core_type<tc>, window_params = [{transform_indices = @transform_0, window_bounds = array<i64: 1, 18, 256>}, {pipeline_mode = #tpu.pipeline_mode<synchronous>, transform_indices = @transform_1, window_bounds = array<i64: 3, 256, 256>}, {pipeline_mode = #tpu.pipeline_mode<synchronous>, transform_indices = @transform_2, window_bounds = array<i64: 1, 256>}, {pipeline_mode = #tpu.pipeline_mode<synchronous>, transform_indices = @transform_3, window_bounds = array<i64: 3, 256, 256>}, {pipeline_mode = #tpu.pipeline_mode<synchronous>, transform_indices = @transform_4, window_bounds = array<i64: 1, 256>}, {transform_indices = @transform_5, window_bounds = array<i64: 1, 16, 256>}]} {
    %c0 = arith.constant 0 : index
    %c0_0 = arith.constant 0 : index
    %c0_1 = arith.constant 0 : index
    %0 = vector.load %arg1[%c0, %c0_0, %c0_1] : memref<1x18x256xf32, #tpu.memory_space<vmem>>, vector<1x18x256xf32>
    %1 = vector.shape_cast %0 : vector<1x18x256xf32> to vector<18x256xf32>
    %2 = vector.extract_strided_slice %1 {offsets = [0, 0], sizes = [16, 256], strides = [1, 1]} : vector<18x256xf32> to vector<16x256xf32>
    %c0_2 = arith.constant 0 : index
    %c0_3 = arith.constant 0 : index
    %c0_4 = arith.constant 0 : index
    %3 = vector.load %arg2[%c0_2, %c0_3, %c0_4] : memref<3x256x256xf32, #tpu.memory_space<vmem>>, vector<1x256x256xf32>
    %4 = vector.shape_cast %3 : vector<1x256x256xf32> to vector<256x256xf32>
    %cst = arith.constant dense<0.000000e+00> : vector<16x256xf32>
    %5 = tpu.matmul %2, %4, %cst {dimension_numbers = #tpu.dot_dimension_numbers<[1], [0], [0], [1], [0, 0, 1, 1], [], []>} : vector<16x256xf32>, vector<256x256xf32>, vector<16x256xf32> -> vector<16x256xf32>
    %6 = vector.extract_strided_slice %1 {offsets = [1, 0], sizes = [16, 256], strides = [1, 1]} : vector<18x256xf32> to vector<16x256xf32>
    %c1 = arith.constant 1 : index
    %c0_5 = arith.constant 0 : index
    %c0_6 = arith.constant 0 : index
    %7 = vector.load %arg2[%c1, %c0_5, %c0_6] : memref<3x256x256xf32, #tpu.memory_space<vmem>>, vector<1x256x256xf32>
    %8 = vector.shape_cast %7 : vector<1x256x256xf32> to vector<256x256xf32>
    %cst_7 = arith.constant dense<0.000000e+00> : vector<16x256xf32>
    %9 = tpu.matmul %6, %8, %cst_7 {dimension_numbers = #tpu.dot_dimension_numbers<[1], [0], [0], [1], [0, 0, 1, 1], [], []>} : vector<16x256xf32>, vector<256x256xf32>, vector<16x256xf32> -> vector<16x256xf32>
    %10 = arith.addf %5, %9 : vector<16x256xf32>
    %11 = vector.extract_strided_slice %1 {offsets = [2, 0], sizes = [16, 256], strides = [1, 1]} : vector<18x256xf32> to vector<16x256xf32>
    %c2 = arith.constant 2 : index
    %c0_8 = arith.constant 0 : index
    %c0_9 = arith.constant 0 : index
    %12 = vector.load %arg2[%c2, %c0_8, %c0_9] : memref<3x256x256xf32, #tpu.memory_space<vmem>>, vector<1x256x256xf32>
    %13 = vector.shape_cast %12 : vector<1x256x256xf32> to vector<256x256xf32>
    %cst_10 = arith.constant dense<0.000000e+00> : vector<16x256xf32>
    %14 = tpu.matmul %11, %13, %cst_10 {dimension_numbers = #tpu.dot_dimension_numbers<[1], [0], [0], [1], [0, 0, 1, 1], [], []>} : vector<16x256xf32>, vector<256x256xf32>, vector<16x256xf32> -> vector<16x256xf32>
    %15 = arith.addf %10, %14 : vector<16x256xf32>
    %c0_11 = arith.constant 0 : index
    %c0_12 = arith.constant 0 : index
    %16 = vector.load %arg3[%c0_11, %c0_12] : memref<1x256xf32, #tpu.memory_space<vmem>>, vector<1x256xf32>
    %17 = vector.broadcast %16 : vector<1x256xf32> to vector<16x256xf32>
    %18 = arith.addf %15, %17 : vector<16x256xf32>
    %cst_13 = arith.constant 0.000000e+00 : f32
    %19 = vector.broadcast %cst_13 : f32 to vector<16x256xf32>
    %20 = arith.maximumf %18, %19 : vector<16x256xf32>
    %cst_14 = arith.constant 0.000000e+00 : f32
    %21 = vector.broadcast %cst_14 : f32 to vector<1x256xf32>
    %c0_15 = arith.constant 0 : index
    %c0_16 = arith.constant 0 : index
    %22 = vector.load %arg7[%c0_15, %c0_16] : memref<18x256xf32, #tpu.memory_space<vmem>>, vector<1x256xf32>
    tpu.vector_store %arg7[%c0_15, %c0_16], %21 {strides = array<i32>} : memref<18x256xf32, #tpu.memory_space<vmem>>, vector<1x256xf32>,
    %c17 = arith.constant 17 : index
    %c0_17 = arith.constant 0 : index
    %23 = vector.load %arg7[%c17, %c0_17] : memref<18x256xf32, #tpu.memory_space<vmem>>, vector<1x256xf32>
    tpu.vector_store %arg7[%c17, %c0_17], %21 {strides = array<i32>} : memref<18x256xf32, #tpu.memory_space<vmem>>, vector<1x256xf32>,
    %c1_18 = arith.constant 1 : index
    %c0_19 = arith.constant 0 : index
    %24 = vector.load %arg7[%c1_18, %c0_19] : memref<18x256xf32, #tpu.memory_space<vmem>>, vector<16x256xf32>
    tpu.vector_store %arg7[%c1_18, %c0_19], %20 {strides = array<i32>} : memref<18x256xf32, #tpu.memory_space<vmem>>, vector<16x256xf32>,
    %c0_20 = arith.constant 0 : index
    %c0_21 = arith.constant 0 : index
    %25 = vector.load %arg7[%c0_20, %c0_21] : memref<18x256xf32, #tpu.memory_space<vmem>>, vector<16x256xf32>
    %c0_22 = arith.constant 0 : index
    %c0_23 = arith.constant 0 : index
    %c0_24 = arith.constant 0 : index
    %26 = vector.load %arg4[%c0_22, %c0_23, %c0_24] : memref<3x256x256xf32, #tpu.memory_space<vmem>>, vector<1x256x256xf32>
    %27 = vector.shape_cast %26 : vector<1x256x256xf32> to vector<256x256xf32>
    %cst_25 = arith.constant dense<0.000000e+00> : vector<16x256xf32>
    %28 = tpu.matmul %25, %27, %cst_25 {dimension_numbers = #tpu.dot_dimension_numbers<[1], [0], [0], [1], [0, 0, 1, 1], [], []>} : vector<16x256xf32>, vector<256x256xf32>, vector<16x256xf32> -> vector<16x256xf32>
    %c1_26 = arith.constant 1 : index
    %c0_27 = arith.constant 0 : index
    %29 = vector.load %arg7[%c1_26, %c0_27] : memref<18x256xf32, #tpu.memory_space<vmem>>, vector<16x256xf32>
    %c1_28 = arith.constant 1 : index
    %c0_29 = arith.constant 0 : index
    %c0_30 = arith.constant 0 : index
    %30 = vector.load %arg4[%c1_28, %c0_29, %c0_30] : memref<3x256x256xf32, #tpu.memory_space<vmem>>, vector<1x256x256xf32>
    %31 = vector.shape_cast %30 : vector<1x256x256xf32> to vector<256x256xf32>
    %cst_31 = arith.constant dense<0.000000e+00> : vector<16x256xf32>
    %32 = tpu.matmul %29, %31, %cst_31 {dimension_numbers = #tpu.dot_dimension_numbers<[1], [0], [0], [1], [0, 0, 1, 1], [], []>} : vector<16x256xf32>, vector<256x256xf32>, vector<16x256xf32> -> vector<16x256xf32>
    %33 = arith.addf %28, %32 : vector<16x256xf32>
    %c2_32 = arith.constant 2 : index
    %c0_33 = arith.constant 0 : index
    %34 = vector.load %arg7[%c2_32, %c0_33] : memref<18x256xf32, #tpu.memory_space<vmem>>, vector<16x256xf32>
    %c2_34 = arith.constant 2 : index
    %c0_35 = arith.constant 0 : index
    %c0_36 = arith.constant 0 : index
    %35 = vector.load %arg4[%c2_34, %c0_35, %c0_36] : memref<3x256x256xf32, #tpu.memory_space<vmem>>, vector<1x256x256xf32>
    %36 = vector.shape_cast %35 : vector<1x256x256xf32> to vector<256x256xf32>
    %cst_37 = arith.constant dense<0.000000e+00> : vector<16x256xf32>
    %37 = tpu.matmul %34, %36, %cst_37 {dimension_numbers = #tpu.dot_dimension_numbers<[1], [0], [0], [1], [0, 0, 1, 1], [], []>} : vector<16x256xf32>, vector<256x256xf32>, vector<16x256xf32> -> vector<16x256xf32>
    %38 = arith.addf %33, %37 : vector<16x256xf32>
    %c0_38 = arith.constant 0 : index
    %c0_39 = arith.constant 0 : index
    %39 = vector.load %arg5[%c0_38, %c0_39] : memref<1x256xf32, #tpu.memory_space<vmem>>, vector<1x256xf32>
    %40 = vector.broadcast %39 : vector<1x256xf32> to vector<16x256xf32>
    %41 = arith.addf %38, %40 : vector<16x256xf32>
    %42 = vector.extract_strided_slice %1 {offsets = [1, 0], sizes = [16, 256], strides = [1, 1]} : vector<18x256xf32> to vector<16x256xf32>
    %43 = arith.addf %42, %41 : vector<16x256xf32>
    %c0_40 = arith.constant 0 : index
    %c0_41 = arith.constant 0 : index
    %c0_42 = arith.constant 0 : index
    %44 = vector.load %arg6[%c0_40, %c0_41, %c0_42] : memref<1x16x256xf32, #tpu.memory_space<vmem>>, vector<1x16x256xf32>
    %45 = vector.shape_cast %44 : vector<1x16x256xf32> to vector<16x256xf32>
    %46 = vector.shape_cast %43 : vector<16x256xf32> to vector<1x16x256xf32>
    tpu.vector_store %arg6[%c0_40, %c0_41, %c0_42], %46 {strides = array<i32>} : memref<1x16x256xf32, #tpu.memory_space<vmem>>, vector<1x16x256xf32>,
    return
  }
  func.func @transform_0(%arg0: i32) -> (i32, i32, i32) {
    %c0_i32 = arith.constant 0 : i32
    %c0_i32_0 = arith.constant 0 : i32
    %c0_i32_1 = arith.constant 0 : i32
    return %arg0, %c0_i32, %c0_i32_0 : i32, i32, i32
  }
  func.func @transform_1(%arg0: i32) -> (i32, i32, i32) {
    %c0_i32 = arith.constant 0 : i32
    %c0_i32_0 = arith.constant 0 : i32
    %c0_i32_1 = arith.constant 0 : i32
    %c0_i32_2 = arith.constant 0 : i32
    return %c0_i32, %c0_i32_0, %c0_i32_1 : i32, i32, i32
  }
  func.func @transform_2(%arg0: i32) -> (i32, i32) {
    %c0_i32 = arith.constant 0 : i32
    %c0_i32_0 = arith.constant 0 : i32
    %c0_i32_1 = arith.constant 0 : i32
    return %c0_i32, %c0_i32_0 : i32, i32
  }
  func.func @transform_3(%arg0: i32) -> (i32, i32, i32) {
    %c0_i32 = arith.constant 0 : i32
    %c0_i32_0 = arith.constant 0 : i32
    %c0_i32_1 = arith.constant 0 : i32
    %c0_i32_2 = arith.constant 0 : i32
    return %c0_i32, %c0_i32_0, %c0_i32_1 : i32, i32, i32
  }
  func.func @transform_4(%arg0: i32) -> (i32, i32) {
    %c0_i32 = arith.constant 0 : i32
    %c0_i32_0 = arith.constant 0 : i32
    %c0_i32_1 = arith.constant 0 : i32
    return %c0_i32, %c0_i32_0 : i32, i32
  }
  func.func @transform_5(%arg0: i32) -> (i32, i32, i32) {
    %c0_i32 = arith.constant 0 : i32
    %c0_i32_0 = arith.constant 0 : i32
    %c0_i32_1 = arith.constant 0 : i32
    return %arg0, %c0_i32, %c0_i32_0 : i32, i32, i32
  }
}

</mosaic_0001>

<llo_original>
// kernel: tpu_custom_call.1
$region0: #{tpu_custom_call.1}
  #allocation0 [shape = 'u32[]', space=smem, size = 0x4, offset = 0x4, fixed_abs, tag = 'smem constant byte address 0x4 - core index']
  #allocation1 [shape = 'u32[144,128]{1,0:T(1,128)}', space=vmem, size = 0x12000, scoped, tag = 'internal scratch']
  #allocation2 [shape = 'f32[18,256]{1,0:T(8,128)}', space=vmem, size = 0x6000, scoped, tag = 'scratch operand']
  %s0 = inlined_call_operand.vmem [shape: f32[2,18,256], index: 0, kind: input, shape index: {}]
  %s1 = inlined_call_operand.hbm [shape: f32[3,256,256], index: 1, kind: input, shape index: {}]
  %s2 = inlined_call_operand.vmem [shape: f32[1,256], index: 2, kind: input, shape index: {}]
  %s3 = inlined_call_operand.hbm [shape: f32[3,256,256], index: 3, kind: input, shape index: {}]
  %s4 = inlined_call_operand.vmem [shape: f32[1,256], index: 4, kind: input, shape index: {}]
  %s5 = inlined_call_operand.hbm [shape: f32[2,16,256], index: 5, kind: output, shape index: {}]
  %s6 = sld [smem:[#allocation0]]
  $region61: #{tpu_custom_call.1} parent=0
    _
  %s8 = ssub.s32 1, %s6
  %s9 = scalar_select 0, %s8, %s6
  $region1: #{tpu_custom_call.1} parent=0
    #allocation3 [shape = 'u8[786432]{0}', space=vmem, size = 0xc0000, scoped, tag = 'input window, operand 1, single buffered']
    #allocation4 [shape = 's32[2]{0}', space=sflag, size = 0x8, scoped, tag = 'scoped memory for tpu_custom_call.1']
    #allocation5 [shape = 's32[2]{0}', space=sflag, size = 0x8, scoped, tag = 'scoped memory for tpu_custom_call.1']
    #allocation6 [shape = 'u8[786432]{0}', space=vmem, size = 0xc0000, scoped, tag = 'input window, operand 3, single buffered']
    #allocation7 [shape = 's32[1]{0}', space=sflag, size = 0x4, scoped, tag = 'scoped memory for tpu_custom_call.1']
    #allocation8 [shape = 'u8[32768]{0}', space=vmem, size = 0x8000, scoped, tag = 'output window, operand 0']
    %10 = vsyncpa [#allocation4], 0
    %11 = vsyncpa [#allocation7], 0
    %12 = vsyncpa [#allocation5], 0
    %s13 = scalar_lea.sflag [#allocation5], 1
    %14 = vsyncpa %s13, 0
    loop: start=0, step=1, limit=4
    $region2: #{tpu_custom_call.1} parent=1 // loop_pre_header
      _
    $region3: #{tpu_custom_call.1} parent=1 // loop_header
      %s16 = sphi 0, %s20
      %p17 = scmp.ge.s32.totalorder %s16, 4
      %s26 = sphi 0, %s28
      %s29 = sphi 0, %s26
      %s30 = sphi 0, %s29
      %s46 = sphi 0, %s30
      %s50 = sphi 0, %s50
      %s52 = sphi 0, %s50
      %s53 = sphi 0, %s52
      %s67 = sphi 0, %s53
      %s71 = sphi 0, %s71
      %s73 = sphi 0, %s71
      %s74 = sphi 0, %s73
      %s88 = sphi 0, %s74
      %s92 = sphi 0, %s92
      %s94 = sphi 0, %s92
      %s95 = sphi 0, %s94
      %s109 = sphi 0, %s95
      %s113 = sphi 0, %s113
      %s115 = sphi 0, %s113
      %s116 = sphi 0, %s115
      %s130 = sphi 0, %s116
      %s136 = sphi 0, %s138
      %s139 = sphi 0, %s136
      %s140 = sphi 0, %s139
      %s156 = sphi 0, %s140
    $region4: #{tpu_custom_call.1} parent=1 // loop_header_branch
      %19 = sbr.rel (%p17) target = $region8
    $region5: #{tpu_custom_call.1} parent=1 // loop_body
      %s21 = ssub.s32 %s16, 1
      %s22 = ssub.s32 %s16, 2
      %s23 = sadd.s32 %s16, 1
      %s24 = ssub.s32 %s16, %s23
      %p25 = scmp.eq.s32.totalorder %s24, 0
      %s27 = sadd.s32 %s26, 1
      %s28 = scalar_select %p25, %s26, %s27
      %p31 = pneg %p25
      %p32 = scmp.eq.s32.totalorder %s16, 1
      %p33 = por %p31, %p32
      %p34 = scmp.ne.s32.totalorder %s26, %s29
      %p35 = scmp.eq.s32.totalorder %s16, 0
      %p36 = por %p34, %p35
      %p37 = scmp.ne.s32.totalorder %s26, %s29
      %p38 = scmp.eq.s32.totalorder %s21, 1
      %p39 = por %p37, %p38
      %p40 = scmp.ne.s32.totalorder %s29, %s30
      %p41 = scmp.eq.s32.totalorder %s21, 0
      %p42 = por %p40, %p41
      %p43 = scmp.ne.s32.totalorder %s29, %s30
      %p44 = scmp.eq.s32.totalorder %s22, 1
      %p45 = por %p43, %p44
      %p47 = scmp.ne.s32.totalorder %s30, %s46
      %p48 = scmp.eq.s32.totalorder %s22, 0
      %p49 = por %p47, %p48
      %s51 = sadd.s32 %s50, 1
      %p54 = scmp.eq.s32.totalorder %s16, 1
      %p55 = scmp.ne.s32.totalorder %s50, %s52
      %p56 = scmp.eq.s32.totalorder %s16, 0
      %p57 = por %p55, %p56
      %p58 = scmp.ne.s32.totalorder %s50, %s52
      %p59 = scmp.eq.s32.totalorder %s21, 1
      %p60 = por %p58, %p59
      %p61 = scmp.ne.s32.totalorder %s52, %s53
      %p62 = scmp.eq.s32.totalorder %s21, 0
      %p63 = por %p61, %p62
      %p64 = scmp.ne.s32.totalorder %s52, %s53
      %p65 = scmp.eq.s32.totalorder %s22, 1
      %p66 = por %p64, %p65
      %p68 = scmp.ne.s32.totalorder %s53, %s67
      %p69 = scmp.eq.s32.totalorder %s22, 0
      %p70 = por %p68, %p69
      %s72 = sadd.s32 %s71, 1
      %p75 = scmp.eq.s32.totalorder %s16, 1
      %p76 = scmp.ne.s32.totalorder %s71, %s73
      %p77 = scmp.eq.s32.totalorder %s16, 0
      %p78 = por %p76, %p77
      %p79 = scmp.ne.s32.totalorder %s71, %s73
      %p80 = scmp.eq.s32.totalorder %s21, 1
      %p81 = por %p79, %p80
      %p82 = scmp.ne.s32.totalorder %s73, %s74
      %p83 = scmp.eq.s32.totalorder %s21, 0
      %p84 = por %p82, %p83
      %p85 = scmp.ne.s32.totalorder %s73, %s74
      %p86 = scmp.eq.s32.totalorder %s22, 1
      %p87 = por %p85, %p86
      %p89 = scmp.ne.s32.totalorder %s74, %s88
      %p90 = scmp.eq.s32.totalorder %s22, 0
      %p91 = por %p89, %p90
      %s93 = sadd.s32 %s92, 1
      %p96 = scmp.eq.s32.totalorder %s16, 1
      %p97 = scmp.ne.s32.totalorder %s92, %s94
      %p98 = scmp.eq.s32.totalorder %s16, 0
      %p99 = por %p97, %p98
      %p100 = scmp.ne.s32.totalorder %s92, %s94
      %p101 = scmp.eq.s32.totalorder %s21, 1
      %p102 = por %p100, %p101
      %p103 = scmp.ne.s32.totalorder %s94, %s95
      %p104 = scmp.eq.s32.totalorder %s21, 0
      %p105 = por %p103, %p104
      %p106 = scmp.ne.s32.totalorder %s94, %s95
      %p107 = scmp.eq.s32.totalorder %s22, 1
      %p108 = por %p106, %p107
      %p110 = scmp.ne.s32.totalorder %s95, %s109
      %p111 = scmp.eq.s32.totalorder %s22, 0
      %p112 = por %p110, %p111
      %s114 = sadd.s32 %s113, 1
      %p117 = scmp.eq.s32.totalorder %s16, 1
      %p118 = scmp.ne.s32.totalorder %s113, %s115
      %p119 = scmp.eq.s32.totalorder %s16, 0
      %p120 = por %p118, %p119
      %p121 = scmp.ne.s32.totalorder %s113, %s115
      %p122 = scmp.eq.s32.totalorder %s21, 1
      %p123 = por %p121, %p122
      %p124 = scmp.ne.s32.totalorder %s115, %s116
      %p125 = scmp.eq.s32.totalorder %s21, 0
      %p126 = por %p124, %p125
      %p127 = scmp.ne.s32.totalorder %s115, %s116
      %p128 = scmp.eq.s32.totalorder %s22, 1
      %p129 = por %p127, %p128
      %p131 = scmp.ne.s32.totalorder %s116, %s130
      %p132 = scmp.eq.s32.totalorder %s22, 0
      %p133 = por %p131, %p132
      %s134 = ssub.s32 %s16, %s23
      %p135 = scmp.eq.s32.totalorder %s134, 0
      %s137 = sadd.s32 %s136, 1
      %s138 = scalar_select %p135, %s136, %s137
      %p141 = pneg %p135
      %p142 = scmp.eq.s32.totalorder %s16, 1
      %p143 = por %p141, %p142
      %p144 = scmp.ne.s32.totalorder %s136, %s139
      %p145 = scmp.eq.s32.totalorder %s16, 0
      %p146 = por %p144, %p145
      %p147 = scmp.ne.s32.totalorder %s136, %s139
      %p148 = scmp.eq.s32.totalorder %s21, 1
      %p149 = por %p147, %p148
      %p150 = scmp.ne.s32.totalorder %s139, %s140
      %p151 = scmp.eq.s32.totalorder %s21, 0
      %p152 = por %p150, %p151
      %p153 = scmp.ne.s32.totalorder %s139, %s140
      %p154 = scmp.eq.s32.totalorder %s22, 1
      %p155 = por %p153, %p154
      %p157 = scmp.ne.s32.totalorder %s140, %s156
      %p158 = scmp.eq.s32.totalorder %s22, 0
      %p159 = por %p157, %p158
      %p160 = scmp.le.s32.totalorder 1, %s16
      %p161 = scmp.lt.s32.totalorder %s16, 3
      %p162 = pnand %p160, %p161
      %p163 = pneg %p162
      // Predicated region
      $region9: #{tpu_custom_call.1} parent=5 // pred_check
        _
      $region10: #{tpu_custom_call.1} parent=5 // pred_check_branch
        %165 = sbr.rel (%p162) target = $region12
      $region11: #{tpu_custom_call.1} parent=5 // pred_region
        %s166 = ssub.s32 %s16, 1
        // Predicated region
        $region13: #{tpu_custom_call.1} parent=11 // pred_check
          %p167 = pneg %p63
        $region14: #{tpu_custom_call.1} parent=11 // pred_check_branch
          %169 = sbr.rel (%p167) target = $region16
        $region15: #{tpu_custom_call.1} parent=11 // pred_region
          %s171 = ssub.s32 24576, 24576
          %172 = vsyncadd [#allocation4], %s171
          %s173 = sshll.u32 [#allocation3], 4
          %s174 = int_to_ptr.vmem [resolvable:$true] %s173
          %179 = dma.hbm_to_vmem [thread:$0]  %s1, 24576, %s174, [#allocation4], 256, 256, 16
        $region16: #{tpu_custom_call.1} parent=11 // pred_fallthru
          _
        // Predicated region
        $region17: #{tpu_custom_call.1} parent=11 // pred_check
          %p180 = pneg %p84
        $region18: #{tpu_custom_call.1} parent=11 // pred_check_branch
          %182 = sbr.rel (%p180) target = $region20
        $region19: #{tpu_custom_call.1} parent=11 // pred_region
          _
        $region20: #{tpu_custom_call.1} parent=11 // pred_fallthru
          _
        // Predicated region
        $region21: #{tpu_custom_call.1} parent=11 // pred_check
          %p183 = pneg %p105
        $region22: #{tpu_custom_call.1} parent=11 // pred_check_branch
          %185 = sbr.rel (%p183) target = $region24
        $region23: #{tpu_custom_call.1} parent=11 // pred_region
          %s187 = ssub.s32 24576, 24576
          %188 = vsyncadd [#allocation7], %s187
          %s189 = sshll.u32 [#allocation6], 4
          %s190 = int_to_ptr.vmem [resolvable:$true] %s189
          %195 = dma.hbm_to_vmem [thread:$0]  %s3, 24576, %s190, [#allocation7], 256, 256, 16
        $region24: #{tpu_custom_call.1} parent=11 // pred_fallthru
          _
        // Predicated region
        $region25: #{tpu_custom_call.1} parent=11 // pred_check
          %p196 = pneg %p126
        $region26: #{tpu_custom_call.1} parent=11 // pred_check_branch
          %198 = sbr.rel (%p196) target = $region28
        $region27: #{tpu_custom_call.1} parent=11 // pred_region
          _
        $region28: #{tpu_custom_call.1} parent=11 // pred_fallthru
          _
      $region12: #{tpu_custom_call.1} parent=5 // pred_fallthru
        _
      %p199 = scmp.lt.s32.totalorder %s16, 2
      // Predicated region
      $region29: #{tpu_custom_call.1} parent=5 // pred_check
        %p200 = pneg %p199
      $region30: #{tpu_custom_call.1} parent=5 // pred_check_branch
        %202 = sbr.rel (%p200) target = $region32
      $region31: #{tpu_custom_call.1} parent=5 // pred_region
        // Predicated region
        $region33: #{tpu_custom_call.1} parent=31 // pred_check
          %p203 = pneg %p36
        $region34: #{tpu_custom_call.1} parent=31 // pred_check_branch
          %205 = sbr.rel (%p203) target = $region36
        $region35: #{tpu_custom_call.1} parent=31 // pred_region
          %p206 = scmp.lt.s32.totalorder %s16, 1
          %s207 = scalar_select %p206, %s16, 1
          %s208 = smul.addr %s207, 6
          %s209 = smul.addr %s208, 8
          %s210 = scalar_lea.vmem %s0, %s209
        $region36: #{tpu_custom_call.1} parent=31 // pred_fallthru
          _
      $region32: #{tpu_custom_call.1} parent=5 // pred_fallthru
        _
      %p211 = scmp.le.s32.totalorder 1, %s16
      %p212 = scmp.lt.s32.totalorder %s16, 3
      %p213 = pnand %p211, %p212
      %p214 = pneg %p213
      // Predicated region
      $region37: #{tpu_custom_call.1} parent=5 // pred_check
        _
      $region38: #{tpu_custom_call.1} parent=5 // pred_check_branch
        %216 = sbr.rel (%p213) target = $region40
      $region39: #{tpu_custom_call.1} parent=5 // pred_region
        %s217 = ssub.s32 %s16, 1
        // Predicated region
        $region41: #{tpu_custom_call.1} parent=39 // pred_check
          %p218 = pneg %p63
        $region42: #{tpu_custom_call.1} parent=39 // pred_check_branch
          %220 = sbr.rel (%p218) target = $region44
        $region43: #{tpu_custom_call.1} parent=39 // pred_region
          %221 = dma.done [#allocation4], 24576
        $region44: #{tpu_custom_call.1} parent=39 // pred_fallthru
          _
        // Predicated region
        $region45: #{tpu_custom_call.1} parent=39 // pred_check
          %p222 = pneg %p105
        $region46: #{tpu_custom_call.1} parent=39 // pred_check_branch
          %224 = sbr.rel (%p222) target = $region48
        $region47: #{tpu_custom_call.1} parent=39 // pred_region
          %225 = dma.done [#allocation7], 24576
        $region48: #{tpu_custom_call.1} parent=39 // pred_fallthru
          _
        %p226 = scmp.lt.s32.totalorder %s21, 1
        %s227 = scalar_select %p226, %s21, 1
        %s228 = smul.addr %s227, 6
        %s229 = smul.addr %s228, 8
        %s230 = scalar_lea.vmem %s0, %s229
        %p231 = pneg %p42
        %p232 = pneg %p39
        %p233 = pneg %p63
        %p234 = pneg %p60
        %p235 = pneg %p84
        %p236 = pneg %p81
        %p237 = pneg %p105
        %p238 = pneg %p102
        %p239 = pneg %p126
        %p240 = pneg %p123
        %p241 = pneg %p152
        %p242 = pneg %p149
        %s243 = sand.u32 %s139, 1
        %s244 = scalar_lea.sflag [#allocation5], %s243
        %s245 = sand.u32 %s139, 1
        %s246 = smul.addr %s245, 32
        %s247 = scalar_lea.vmem [#allocation8], %s246
        %p248 = scmp.lt.s32.totalorder %s21, 1
        %s249 = scalar_select %p248, %s21, 1
        %s250 = smul.addr %s249, 6
        %s251 = smul.addr %s250, 8
        %s252 = scalar_lea.vmem %s0, %s251
        %v253 = vld [vmem:[%s252] sm:$0xff]
        %v254 = vld [vmem:[%s252 + $0x8] sm:$0xff]
        %v255 = vld [vmem:[%s252 + $0x10] sm:$0xff]
        %v256 = vld [vmem:[%s252 + $0x18] sm:$0xff]
        %v257 = vld [vmem:[%s252 + $0x20] sm:$0x3]
        %v258 = vld [vmem:[%s252 + $0x28] sm:$0x3]
        %v259 = vld [vmem:[#allocation3] sm:$0xff]
        %v260 = vld [vmem:[#allocation3 + $0x8] sm:$0xff]
        %v261 = vld [vmem:[#allocation3 + $0x10] sm:$0xff]
        %v262 = vld [vmem:[#allocation3 + $0x18] sm:$0xff]
        %v263 = vld [vmem:[#allocation3 + $0x20] sm:$0xff]
        %v264 = vld [vmem:[#allocation3 + $0x28] sm:$0xff]
        %v265 = vld [vmem:[#allocation3 + $0x30] sm:$0xff]
        %v266 = vld [vmem:[#allocation3 + $0x38] sm:$0xff]
        %v267 = vld [vmem:[#allocation3 + $0x40] sm:$0xff]
        %v268 = vld [vmem:[#allocation3 + $0x48] sm:$0xff]
        %v269 = vld [vmem:[#allocation3 + $0x50] sm:$0xff]
        %v270 = vld [vmem:[#allocation3 + $0x58] sm:$0xff]
        %v271 = vld [vmem:[#allocation3 + $0x60] sm:$0xff]
        %v272 = vld [vmem:[#allocation3 + $0x68] sm:$0xff]
        %v273 = vld [vmem:[#allocation3 + $0x70] sm:$0xff]
        %v274 = vld [vmem:[#allocation3 + $0x78] sm:$0xff]
        %v275 = vld [vmem:[#allocation3 + $0x80] sm:$0xff]
        %v276 = vld [vmem:[#allocation3 + $0x88] sm:$0xff]
        %v277 = vld [vmem:[#allocation3 + $0x90] sm:$0xff]
        %v278 = vld [vmem:[#allocation3 + $0x98] sm:$0xff]
        %v279 = vld [vmem:[#allocation3 + $0xa0] sm:$0xff]
        %v280 = vld [vmem:[#allocation3 + $0xa8] sm:$0xff]
        %v281 = vld [vmem:[#allocation3 + $0xb0] sm:$0xff]
        %v282 = vld [vmem:[#allocation3 + $0xb8] sm:$0xff]
        %v283 = vld [vmem:[#allocation3 + $0xc0] sm:$0xff]
        %v284 = vld [vmem:[#allocation3 + $0xc8] sm:$0xff]
        %v285 = vld [vmem:[#allocation3 + $0xd0] sm:$0xff]
        %v286 = vld [vmem:[#allocation3 + $0xd8] sm:$0xff]
        %v287 = vld [vmem:[#allocation3 + $0xe0] sm:$0xff]
        %v288 = vld [vmem:[#allocation3 + $0xe8] sm:$0xff]
        %v289 = vld [vmem:[#allocation3 + $0xf0] sm:$0xff]
        %v290 = vld [vmem:[#allocation3 + $0xf8] sm:$0xff]
        %v291 = vld [vmem:[#allocation3 + $0x100] sm:$0xff]
        %v292 = vld [vmem:[#allocation3 + $0x108] sm:$0xff]
        %v293 = vld [vmem:[#allocation3 + $0x110] sm:$0xff]
        %v294 = vld [vmem:[#allocation3 + $0x118] sm:$0xff]
        %v295 = vld [vmem:[#allocation3 + $0x120] sm:$0xff]
        %v296 = vld [vmem:[#allocation3 + $0x128] sm:$0xff]
        %v297 = vld [vmem:[#allocation3 + $0x130] sm:$0xff]
        %v298 = vld [vmem:[#allocation3 + $0x138] sm:$0xff]
        %v299 = vld [vmem:[#allocation3 + $0x140] sm:$0xff]
        %v300 = vld [vmem:[#allocation3 + $0x148] sm:$0xff]
        %v301 = vld [vmem:[#allocation3 + $0x150] sm:$0xff]
        %v302 = vld [vmem:[#allocation3 + $0x158] sm:$0xff]
        %v303 = vld [vmem:[#allocation3 + $0x160] sm:$0xff]
        %v304 = vld [vmem:[#allocation3 + $0x168] sm:$0xff]
        %v305 = vld [vmem:[#allocation3 + $0x170] sm:$0xff]
        %v306 = vld [vmem:[#allocation3 + $0x178] sm:$0xff]
        %v307 = vld [vmem:[#allocation3 + $0x180] sm:$0xff]
        %v308 = vld [vmem:[#allocation3 + $0x188] sm:$0xff]
        %v309 = vld [vmem:[#allocation3 + $0x190] sm:$0xff]
        %v310 = vld [vmem:[#allocation3 + $0x198] sm:$0xff]
        %v311 = vld [vmem:[#allocation3 + $0x1a0] sm:$0xff]
        %v312 = vld [vmem:[#allocation3 + $0x1a8] sm:$0xff]
        %v313 = vld [vmem:[#allocation3 + $0x1b0] sm:$0xff]
        %v314 = vld [vmem:[#allocation3 + $0x1b8] sm:$0xff]
        %v315 = vld [vmem:[#allocation3 + $0x1c0] sm:$0xff]
        %v316 = vld [vmem:[#allocation3 + $0x1c8] sm:$0xff]
        %v317 = vld [vmem:[#allocation3 + $0x1d0] sm:$0xff]
        %v318 = vld [vmem:[#allocation3 + $0x1d8] sm:$0xff]
        %v319 = vld [vmem:[#allocation3 + $0x1e0] sm:$0xff]
        %v320 = vld [vmem:[#allocation3 + $0x1e8] sm:$0xff]
        %v321 = vld [vmem:[#allocation3 + $0x1f0] sm:$0xff]
        %v322 = vld [vmem:[#allocation3 + $0x1f8] sm:$0xff]
        %s323 = scalar_lea.vmem [#allocation3], 512
        %v324 = vld [vmem:[%s323] sm:$0xff]
        %v325 = vld [vmem:[%s323 + $0x8] sm:$0xff]
        %v326 = vld [vmem:[%s323 + $0x10] sm:$0xff]
        %v327 = vld [vmem:[%s323 + $0x18] sm:$0xff]
        %v328 = vld [vmem:[%s323 + $0x20] sm:$0xff]
        %v329 = vld [vmem:[%s323 + $0x28] sm:$0xff]
        %v330 = vld [vmem:[%s323 + $0x30] sm:$0xff]
        %v331 = vld [vmem:[%s323 + $0x38] sm:$0xff]
        %v332 = vld [vmem:[%s323 + $0x40] sm:$0xff]
        %v333 = vld [vmem:[%s323 + $0x48] sm:$0xff]
        %v334 = vld [vmem:[%s323 + $0x50] sm:$0xff]
        %v335 = vld [vmem:[%s323 + $0x58] sm:$0xff]
        %v336 = vld [vmem:[%s323 + $0x60] sm:$0xff]
        %v337 = vld [vmem:[%s323 + $0x68] sm:$0xff]
        %v338 = vld [vmem:[%s323 + $0x70] sm:$0xff]
        %v339 = vld [vmem:[%s323 + $0x78] sm:$0xff]
        %v340 = vld [vmem:[%s323 + $0x80] sm:$0xff]
        %v341 = vld [vmem:[%s323 + $0x88] sm:$0xff]
        %v342 = vld [vmem:[%s323 + $0x90] sm:$0xff]
        %v343 = vld [vmem:[%s323 + $0x98] sm:$0xff]
        %v344 = vld [vmem:[%s323 + $0xa0] sm:$0xff]
        %v345 = vld [vmem:[%s323 + $0xa8] sm:$0xff]
        %v346 = vld [vmem:[%s323 + $0xb0] sm:$0xff]
        %v347 = vld [vmem:[%s323 + $0xb8] sm:$0xff]
        %v348 = vld [vmem:[%s323 + $0xc0] sm:$0xff]
        %v349 = vld [vmem:[%s323 + $0xc8] sm:$0xff]
        %v350 = vld [vmem:[%s323 + $0xd0] sm:$0xff]
        %v351 = vld [vmem:[%s323 + $0xd8] sm:$0xff]
        %v352 = vld [vmem:[%s323 + $0xe0] sm:$0xff]
        %v353 = vld [vmem:[%s323 + $0xe8] sm:$0xff]
        %v354 = vld [vmem:[%s323 + $0xf0] sm:$0xff]
        %v355 = vld [vmem:[%s323 + $0xf8] sm:$0xff]
        %v356 = vld [vmem:[%s323 + $0x100] sm:$0xff]
        %v357 = vld [vmem:[%s323 + $0x108] sm:$0xff]
        %v358 = vld [vmem:[%s323 + $0x110] sm:$0xff]
        %v359 = vld [vmem:[%s323 + $0x118] sm:$0xff]
        %v360 = vld [vmem:[%s323 + $0x120] sm:$0xff]
        %v361 = vld [vmem:[%s323 + $0x128] sm:$0xff]
        %v362 = vld [vmem:[%s323 + $0x130] sm:$0xff]
        %v363 = vld [vmem:[%s323 + $0x138] sm:$0xff]
        %v364 = vld [vmem:[%s323 + $0x140] sm:$0xff]
        %v365 = vld [vmem:[%s323 + $0x148] sm:$0xff]
        %v366 = vld [vmem:[%s323 + $0x150] sm:$0xff]
        %v367 = vld [vmem:[%s323 + $0x158] sm:$0xff]
        %v368 = vld [vmem:[%s323 + $0x160] sm:$0xff]
        %v369 = vld [vmem:[%s323 + $0x168] sm:$0xff]
        %v370 = vld [vmem:[%s323 + $0x170] sm:$0xff]
        %v371 = vld [vmem:[%s323 + $0x178] sm:$0xff]
        %v372 = vld [vmem:[%s323 + $0x180] sm:$0xff]
        %v373 = vld [vmem:[%s323 + $0x188] sm:$0xff]
        %v374 = vld [vmem:[%s323 + $0x190] sm:$0xff]
        %v375 = vld [vmem:[%s323 + $0x198] sm:$0xff]
        %v376 = vld [vmem:[%s323 + $0x1a0] sm:$0xff]
        %v377 = vld [vmem:[%s323 + $0x1a8] sm:$0xff]
        %v378 = vld [vmem:[%s323 + $0x1b0] sm:$0xff]
        %v379 = vld [vmem:[%s323 + $0x1b8] sm:$0xff]
        %v380 = vld [vmem:[%s323 + $0x1c0] sm:$0xff]
        %v381 = vld [vmem:[%s323 + $0x1c8] sm:$0xff]
        %v382 = vld [vmem:[%s323 + $0x1d0] sm:$0xff]
        %v383 = vld [vmem:[%s323 + $0x1d8] sm:$0xff]
        %v384 = vld [vmem:[%s323 + $0x1e0] sm:$0xff]
        %v385 = vld [vmem:[%s323 + $0x1e8] sm:$0xff]
        %v386 = vld [vmem:[%s323 + $0x1f0] sm:$0xff]
        %v387 = vld [vmem:[%s323 + $0x1f8] sm:$0xff]
        %vm394 = vcmask 1046528
        %v395 = vrot.slane %v253, 1
        %v396 = vrot.slane %v255, 1
        %v397 = vsel %vm394, %v395, %v396
        %v398 = vrot.slane %v254, 1
        %v399 = vrot.slane %v256, 1
        %v400 = vsel %vm394, %v398, %v399
        %v401 = vrot.slane %v257, 1
        %v402 = vsel %vm394, %v396, %v401
        %v403 = vrot.slane %v258, 1
        %v404 = vsel %vm394, %v399, %v403
        %409 = vmatprep.subr.mxu0 %v355
        %410 = vmatpush1.msra.mxu0 %v354
        %411 = vmatprep.subr.mxu0 %v353
        %412 = vmatpush1.msra.mxu0 %v352
        %413 = vmatprep.subr.mxu0 %v351
        %414 = vmatpush1.msra.mxu0 %v350
        %415 = vmatprep.subr.mxu0 %v349
        %416 = vmatpush1.msra.mxu0 %v348
        %417 = vmatprep.subr.mxu0 %v347
        %418 = vmatpush1.msra.mxu0 %v346
        %419 = vmatprep.subr.mxu0 %v345
        %420 = vmatpush1.msra.mxu0 %v344
        %421 = vmatprep.subr.mxu0 %v343
        %422 = vmatpush1.msra.mxu0 %v342
        %423 = vmatprep.subr.mxu0 %v341
        %424 = vmatpush1.msra.mxu0 %v340
        %425 = vmatprep.subr.mxu0 %v339
        %426 = vmatpush1.msra.mxu0 %v338
        %427 = vmatprep.subr.mxu0 %v337
        %428 = vmatpush1.msra.mxu0 %v336
        %429 = vmatprep.subr.mxu0 %v335
        %430 = vmatpush1.msra.mxu0 %v334
        %431 = vmatprep.subr.mxu0 %v333
        %432 = vmatpush1.msra.mxu0 %v332
        %433 = vmatprep.subr.mxu0 %v331
        %434 = vmatpush1.msra.mxu0 %v330
        %435 = vmatprep.subr.mxu0 %v329
        %436 = vmatpush1.msra.mxu0 %v328
        %437 = vmatprep.subr.mxu0 %v327
        %438 = vmatpush1.msra.mxu0 %v326
        %439 = vmatprep.subr.mxu0 %v325
        %440 = vmatpush1.msra.mxu0 %v324
        %441 = vmatprep.subr.mxu0 %v387
        %442 = vmatpush2.msra.mxu0 %v386
        %443 = vmatprep.subr.mxu0 %v385
        %444 = vmatpush2.msra.mxu0 %v384
        %445 = vmatprep.subr.mxu0 %v383
        %446 = vmatpush2.msra.mxu0 %v382
        %447 = vmatprep.subr.mxu0 %v381
        %448 = vmatpush2.msra.mxu0 %v380
        %449 = vmatprep.subr.mxu0 %v379
        %450 = vmatpush2.msra.mxu0 %v378
        %451 = vmatprep.subr.mxu0 %v377
        %452 = vmatpush2.msra.mxu0 %v376
        %453 = vmatprep.subr.mxu0 %v375
        %454 = vmatpush2.msra.mxu0 %v374
        %455 = vmatprep.subr.mxu0 %v373
        %456 = vmatpush2.msra.mxu0 %v372
        %457 = vmatprep.subr.mxu0 %v371
        %458 = vmatpush2.msra.mxu0 %v370
        %459 = vmatprep.subr.mxu0 %v369
        %460 = vmatpush2.msra.mxu0 %v368
        %461 = vmatprep.subr.mxu0 %v367
        %462 = vmatpush2.msra.mxu0 %v366
        %463 = vmatprep.subr.mxu0 %v365
        %464 = vmatpush2.msra.mxu0 %v364
        %465 = vmatprep.subr.mxu0 %v363
        %466 = vmatpush2.msra.mxu0 %v362
        %467 = vmatprep.subr.mxu0 %v361
        %468 = vmatpush2.msra.mxu0 %v360
        %469 = vmatprep.subr.mxu0 %v359
        %470 = vmatpush2.msra.mxu0 %v358
        %471 = vmatprep.subr.mxu0 %v357
        %472 = vmatpush2.msra.mxu0 %v356
        %473 = vmatprep.mubr.f32.mxu0 %v400
        %474 = vmatmul.mubr.f32.gmra.mxu0 %v397
        %v475 = vpop.f32.mrf.mxu0
        %v476 = vadd.f32 0.0, %v475
        %v477 = vpop.f32.mrf.mxu0
        %v478 = vadd.f32 0.0, %v477
        %479 = vmatprep.mubr.f32.mxu0 %v404
        %480 = vmatmul.mubr.f32.gmra.mxu0 %v402
        %v481 = vpop.f32.mrf.mxu0
        %v482 = vadd.f32 0.0, %v481
        %v483 = vpop.f32.mrf.mxu0
        %v484 = vadd.f32 0.0, %v483
        %485 = vdwg.mxu0
        %486 = vmatprep.subr.mxu0 %v290
        %487 = vmatpush1.msra.mxu0 %v289
        %488 = vmatprep.subr.mxu0 %v288
        %489 = vmatpush1.msra.mxu0 %v287
        %490 = vmatprep.subr.mxu0 %v286
        %491 = vmatpush1.msra.mxu0 %v285
        %492 = vmatprep.subr.mxu0 %v284
        %493 = vmatpush1.msra.mxu0 %v283
        %494 = vmatprep.subr.mxu0 %v282
        %495 = vmatpush1.msra.mxu0 %v281
        %496 = vmatprep.subr.mxu0 %v280
        %497 = vmatpush1.msra.mxu0 %v279
        %498 = vmatprep.subr.mxu0 %v278
        %499 = vmatpush1.msra.mxu0 %v277
        %500 = vmatprep.subr.mxu0 %v276
        %501 = vmatpush1.msra.mxu0 %v275
        %502 = vmatprep.subr.mxu0 %v274
        %503 = vmatpush1.msra.mxu0 %v273
        %504 = vmatprep.subr.mxu0 %v272
        %505 = vmatpush1.msra.mxu0 %v271
        %506 = vmatprep.subr.mxu0 %v270
        %507 = vmatpush1.msra.mxu0 %v269
        %508 = vmatprep.subr.mxu0 %v268
        %509 = vmatpush1.msra.mxu0 %v267
        %510 = vmatprep.subr.mxu0 %v266
        %511 = vmatpush1.msra.mxu0 %v265
        %512 = vmatprep.subr.mxu0 %v264
        %513 = vmatpush1.msra.mxu0 %v263
        %514 = vmatprep.subr.mxu0 %v262
        %515 = vmatpush1.msra.mxu0 %v261
        %516 = vmatprep.subr.mxu0 %v260
        %517 = vmatpush1.msra.mxu0 %v259
        %518 = vmatprep.subr.mxu0 %v322
        %519 = vmatpush2.msra.mxu0 %v321
        %520 = vmatprep.subr.mxu0 %v320
        %521 = vmatpush2.msra.mxu0 %v319
        %522 = vmatprep.subr.mxu0 %v318
        %523 = vmatpush2.msra.mxu0 %v317
        %524 = vmatprep.subr.mxu0 %v316
        %525 = vmatpush2.msra.mxu0 %v315
        %526 = vmatprep.subr.mxu0 %v314
        %527 = vmatpush2.msra.mxu0 %v313
        %528 = vmatprep.subr.mxu0 %v312
        %529 = vmatpush2.msra.mxu0 %v311
        %530 = vmatprep.subr.mxu0 %v310
        %531 = vmatpush2.msra.mxu0 %v309
        %532 = vmatprep.subr.mxu0 %v308
        %533 = vmatpush2.msra.mxu0 %v307
        %534 = vmatprep.subr.mxu0 %v306
        %535 = vmatpush2.msra.mxu0 %v305
        %536 = vmatprep.subr.mxu0 %v304
        %537 = vmatpush2.msra.mxu0 %v303
        %538 = vmatprep.subr.mxu0 %v302
        %539 = vmatpush2.msra.mxu0 %v301
        %540 = vmatprep.subr.mxu0 %v300
        %541 = vmatpush2.msra.mxu0 %v299
        %542 = vmatprep.subr.mxu0 %v298
        %543 = vmatpush2.msra.mxu0 %v297
        %544 = vmatprep.subr.mxu0 %v296
        %545 = vmatpush2.msra.mxu0 %v295
        %546 = vmatprep.subr.mxu0 %v294
        %547 = vmatpush2.msra.mxu0 %v293
        %548 = vmatprep.subr.mxu0 %v292
        %549 = vmatpush2.msra.mxu0 %v291
        %550 = vmatprep.mubr.f32.mxu0 %v254
        %551 = vmatmul.mubr.f32.gmra.mxu0 %v253
        %v552 = vpop.f32.mrf.mxu0
        %v553 = vadd.f32 %v476, %v552
        %v554 = vpop.f32.mrf.mxu0
        %v555 = vadd.f32 %v478, %v554
        %556 = vmatprep.mubr.f32.mxu0 %v256
        %557 = vmatmul.mubr.f32.gmra.mxu0 %v255
        %v558 = vpop.f32.mrf.mxu0
        %v559 = vadd.f32 %v482, %v558
        %v560 = vpop.f32.mrf.mxu0
        %v561 = vadd.f32 %v484, %v560
        %562 = vdwg.mxu0
        %s563 = scalar_lea.vmem [#allocation3], 1024
        %v564 = vld [vmem:[%s563] sm:$0xff]
        %v565 = vld [vmem:[%s563 + $0x8] sm:$0xff]
        %v566 = vld [vmem:[%s563 + $0x10] sm:$0xff]
        %v567 = vld [vmem:[%s563 + $0x18] sm:$0xff]
        %v568 = vld [vmem:[%s563 + $0x20] sm:$0xff]
        %v569 = vld [vmem:[%s563 + $0x28] sm:$0xff]
        %v570 = vld [vmem:[%s563 + $0x30] sm:$0xff]
        %v571 = vld [vmem:[%s563 + $0x38] sm:$0xff]
        %v572 = vld [vmem:[%s563 + $0x40] sm:$0xff]
        %v573 = vld [vmem:[%s563 + $0x48] sm:$0xff]
        %v574 = vld [vmem:[%s563 + $0x50] sm:$0xff]
        %v575 = vld [vmem:[%s563 + $0x58] sm:$0xff]
        %v576 = vld [vmem:[%s563 + $0x60] sm:$0xff]
        %v577 = vld [vmem:[%s563 + $0x68] sm:$0xff]
        %v578 = vld [vmem:[%s563 + $0x70] sm:$0xff]
        %v579 = vld [vmem:[%s563 + $0x78] sm:$0xff]
        %v580 = vld [vmem:[%s563 + $0x80] sm:$0xff]
        %v581 = vld [vmem:[%s563 + $0x88] sm:$0xff]
        %v582 = vld [vmem:[%s563 + $0x90] sm:$0xff]
        %v583 = vld [vmem:[%s563 + $0x98] sm:$0xff]
        %v584 = vld [vmem:[%s563 + $0xa0] sm:$0xff]
        %v585 = vld [vmem:[%s563 + $0xa8] sm:$0xff]
        %v586 = vld [vmem:[%s563 + $0xb0] sm:$0xff]
        %v587 = vld [vmem:[%s563 + $0xb8] sm:$0xff]
        %v588 = vld [vmem:[%s563 + $0xc0] sm:$0xff]
        %v589 = vld [vmem:[%s563 + $0xc8] sm:$0xff]
        %v590 = vld [vmem:[%s563 + $0xd0] sm:$0xff]
        %v591 = vld [vmem:[%s563 + $0xd8] sm:$0xff]
        %v592 = vld [vmem:[%s563 + $0xe0] sm:$0xff]
        %v593 = vld [vmem:[%s563 + $0xe8] sm:$0xff]
        %v594 = vld [vmem:[%s563 + $0xf0] sm:$0xff]
        %v595 = vld [vmem:[%s563 + $0xf8] sm:$0xff]
        %v596 = vld [vmem:[%s563 + $0x100] sm:$0xff]
        %v597 = vld [vmem:[%s563 + $0x108] sm:$0xff]
        %v598 = vld [vmem:[%s563 + $0x110] sm:$0xff]
        %v599 = vld [vmem:[%s563 + $0x118] sm:$0xff]
        %v600 = vld [vmem:[%s563 + $0x120] sm:$0xff]
        %v601 = vld [vmem:[%s563 + $0x128] sm:$0xff]
        %v602 = vld [vmem:[%s563 + $0x130] sm:$0xff]
        %v603 = vld [vmem:[%s563 + $0x138] sm:$0xff]
        %v604 = vld [vmem:[%s563 + $0x140] sm:$0xff]
        %v605 = vld [vmem:[%s563 + $0x148] sm:$0xff]
        %v606 = vld [vmem:[%s563 + $0x150] sm:$0xff]
        %v607 = vld [vmem:[%s563 + $0x158] sm:$0xff]
        %v608 = vld [vmem:[%s563 + $0x160] sm:$0xff]
        %v609 = vld [vmem:[%s563 + $0x168] sm:$0xff]
        %v610 = vld [vmem:[%s563 + $0x170] sm:$0xff]
        %v611 = vld [vmem:[%s563 + $0x178] sm:$0xff]
        %v612 = vld [vmem:[%s563 + $0x180] sm:$0xff]
        %v613 = vld [vmem:[%s563 + $0x188] sm:$0xff]
        %v614 = vld [vmem:[%s563 + $0x190] sm:$0xff]
        %v615 = vld [vmem:[%s563 + $0x198] sm:$0xff]
        %v616 = vld [vmem:[%s563 + $0x1a0] sm:$0xff]
        %v617 = vld [vmem:[%s563 + $0x1a8] sm:$0xff]
        %v618 = vld [vmem:[%s563 + $0x1b0] sm:$0xff]
        %v619 = vld [vmem:[%s563 + $0x1b8] sm:$0xff]
        %v620 = vld [vmem:[%s563 + $0x1c0] sm:$0xff]
        %v621 = vld [vmem:[%s563 + $0x1c8] sm:$0xff]
        %v622 = vld [vmem:[%s563 + $0x1d0] sm:$0xff]
        %v623 = vld [vmem:[%s563 + $0x1d8] sm:$0xff]
        %v624 = vld [vmem:[%s563 + $0x1e0] sm:$0xff]
        %v625 = vld [vmem:[%s563 + $0x1e8] sm:$0xff]
        %v626 = vld [vmem:[%s563 + $0x1f0] sm:$0xff]
        %v627 = vld [vmem:[%s563 + $0x1f8] sm:$0xff]
        %vm628 = vcmask 1045504
        %v629 = vrot.slane %v253, 2
        %v630 = vrot.slane %v255, 2
        %v631 = vsel %vm628, %v629, %v630
        %v632 = vrot.slane %v254, 2
        %v633 = vrot.slane %v256, 2
        %v634 = vsel %vm628, %v632, %v633
        %v635 = vrot.slane %v257, 2
        %v636 = vsel %vm628, %v630, %v635
        %v637 = vrot.slane %v258, 2
        %v638 = vsel %vm628, %v633, %v637
        %643 = vmatprep.subr.mxu0 %v595
        %644 = vmatpush1.msra.mxu0 %v594
        %645 = vmatprep.subr.mxu0 %v593
        %646 = vmatpush1.msra.mxu0 %v592
        %647 = vmatprep.subr.mxu0 %v591
        %648 = vmatpush1.msra.mxu0 %v590
        %649 = vmatprep.subr.mxu0 %v589
        %650 = vmatpush1.msra.mxu0 %v588
        %651 = vmatprep.subr.mxu0 %v587
        %652 = vmatpush1.msra.mxu0 %v586
        %653 = vmatprep.subr.mxu0 %v585
        %654 = vmatpush1.msra.mxu0 %v584
        %655 = vmatprep.subr.mxu0 %v583
        %656 = vmatpush1.msra.mxu0 %v582
        %657 = vmatprep.subr.mxu0 %v581
        %658 = vmatpush1.msra.mxu0 %v580
        %659 = vmatprep.subr.mxu0 %v579
        %660 = vmatpush1.msra.mxu0 %v578
        %661 = vmatprep.subr.mxu0 %v577
        %662 = vmatpush1.msra.mxu0 %v576
        %663 = vmatprep.subr.mxu0 %v575
        %664 = vmatpush1.msra.mxu0 %v574
        %665 = vmatprep.subr.mxu0 %v573
        %666 = vmatpush1.msra.mxu0 %v572
        %667 = vmatprep.subr.mxu0 %v571
        %668 = vmatpush1.msra.mxu0 %v570
        %669 = vmatprep.subr.mxu0 %v569
        %670 = vmatpush1.msra.mxu0 %v568
        %671 = vmatprep.subr.mxu0 %v567
        %672 = vmatpush1.msra.mxu0 %v566
        %673 = vmatprep.subr.mxu0 %v565
        %674 = vmatpush1.msra.mxu0 %v564
        %675 = vmatprep.subr.mxu0 %v627
        %676 = vmatpush2.msra.mxu0 %v626
        %677 = vmatprep.subr.mxu0 %v625
        %678 = vmatpush2.msra.mxu0 %v624
        %679 = vmatprep.subr.mxu0 %v623
        %680 = vmatpush2.msra.mxu0 %v622
        %681 = vmatprep.subr.mxu0 %v621
        %682 = vmatpush2.msra.mxu0 %v620
        %683 = vmatprep.subr.mxu0 %v619
        %684 = vmatpush2.msra.mxu0 %v618
        %685 = vmatprep.subr.mxu0 %v617
        %686 = vmatpush2.msra.mxu0 %v616
        %687 = vmatprep.subr.mxu0 %v615
        %688 = vmatpush2.msra.mxu0 %v614
        %689 = vmatprep.subr.mxu0 %v613
        %690 = vmatpush2.msra.mxu0 %v612
        %691 = vmatprep.subr.mxu0 %v611
        %692 = vmatpush2.msra.mxu0 %v610
        %693 = vmatprep.subr.mxu0 %v609
        %694 = vmatpush2.msra.mxu0 %v608
        %695 = vmatprep.subr.mxu0 %v607
        %696 = vmatpush2.msra.mxu0 %v606
        %697 = vmatprep.subr.mxu0 %v605
        %698 = vmatpush2.msra.mxu0 %v604
        %699 = vmatprep.subr.mxu0 %v603
        %700 = vmatpush2.msra.mxu0 %v602
        %701 = vmatprep.subr.mxu0 %v601
        %702 = vmatpush2.msra.mxu0 %v600
        %703 = vmatprep.subr.mxu0 %v599
        %704 = vmatpush2.msra.mxu0 %v598
        %705 = vmatprep.subr.mxu0 %v597
        %706 = vmatpush2.msra.mxu0 %v596
        %707 = vmatprep.mubr.f32.mxu0 %v634
        %708 = vmatmul.mubr.f32.gmra.mxu0 %v631
        %v709 = vpop.f32.mrf.mxu0
        %v710 = vadd.f32 0.0, %v709
        %v711 = vpop.f32.mrf.mxu0
        %v712 = vadd.f32 0.0, %v711
        %713 = vmatprep.mubr.f32.mxu0 %v638
        %714 = vmatmul.mubr.f32.gmra.mxu0 %v636
        %v715 = vpop.f32.mrf.mxu0
        %v716 = vadd.f32 0.0, %v715
        %v717 = vpop.f32.mrf.mxu0
        %v718 = vadd.f32 0.0, %v717
        %719 = vdwg.mxu0
        %v720 = vadd.f32 %v553, %v710
        %v721 = vadd.f32 %v555, %v712
        %v722 = vadd.f32 %v559, %v716
        %v723 = vadd.f32 %v561, %v718
        %v724 = vld [vmem:[%s2] sm:$0x3]
        %v726 = vlaneseq
        %v727 = vshrl.u32 %v726, 7
        %v728 = vsub.s32 0, %v727
        %v729 = vrot.slane %v724, %v728
        %v730 = vlaneseq
        %v731 = vshrl.u32 %v730, 7
        %v732 = vsub.s32 1, %v731
        %v733 = vrot.slane %v724, %v732
        %v736 = vadd.f32 %v720, %v729
        %v737 = vadd.f32 %v721, %v733
        %v738 = vadd.f32 %v722, %v729
        %v739 = vadd.f32 %v723, %v733
        %v740 = vmax.f32 %v736, 0.0
        %v741 = vmax.f32 %v737, 0.0
        %v742 = vmax.f32 %v738, 0.0
        %v743 = vmax.f32 %v739, 0.0
        %v744 = vlaneseq
        %vm745 = vcmp.ge.s32.totalorder %v744, 0
        %vm746 = vcmp.lt.s32.totalorder %v744, 256
        %vm747 = vmand %vm745, %vm746
        %748 = vst.msk [vmem:[#allocation2] ss:$8 sm:$0x3] %vm747, 0.0
        %749 = vst.msk [vmem:[#allocation2] ss:$8 sm:$0x0] %vm747, 0.0
        %s750 = scalar_lea.vmem [#allocation2], 33
        %751 = vst.msk [vmem:[%s750] ss:$8 sm:$0x3] %vm747, 0.0
        %752 = vst.msk [vmem:[%s750] ss:$8 sm:$0x0] %vm747, 0.0
        %vm757 = vcmask 1040384
        %v758 = vrot.slane %v740, 7
        %v759 = vrot.slane %v741, 7
        %v760 = vrot.slane %v742, 7
        %v761 = vsel %vm757, %v758, %v760
        %v762 = vrot.slane %v743, 7
        %v763 = vsel %vm757, %v759, %v762
        %770 = vst [vmem:[#allocation2] sm:$0xfe] %v758
        %771 = vst [vmem:[#allocation2 + $0x8] sm:$0xfe] %v759
        %772 = vst [vmem:[#allocation2 + $0x10] sm:$0xff] %v761
        %773 = vst [vmem:[#allocation2 + $0x18] sm:$0xff] %v763
        %774 = vst [vmem:[#allocation2 + $0x20] sm:$0x1] %v760
        %775 = vst [vmem:[#allocation2 + $0x28] sm:$0x1] %v762
        %v776 = vld [vmem:[#allocation2] sm:$0xff]
        %v777 = vld [vmem:[#allocation2 + $0x8] sm:$0xff]
        %v778 = vld [vmem:[#allocation2 + $0x10] sm:$0xff]
        %v779 = vld [vmem:[#allocation2 + $0x18] sm:$0xff]
        %v780 = vld [vmem:[#allocation6] sm:$0xff]
        %v781 = vld [vmem:[#allocation6 + $0x8] sm:$0xff]
        %v782 = vld [vmem:[#allocation6 + $0x10] sm:$0xff]
        %v783 = vld [vmem:[#allocation6 + $0x18] sm:$0xff]
        %v784 = vld [vmem:[#allocation6 + $0x20] sm:$0xff]
        %v785 = vld [vmem:[#allocation6 + $0x28] sm:$0xff]
        %v786 = vld [vmem:[#allocation6 + $0x30] sm:$0xff]
        %v787 = vld [vmem:[#allocation6 + $0x38] sm:$0xff]
        %v788 = vld [vmem:[#allocation6 + $0x40] sm:$0xff]
        %v789 = vld [vmem:[#allocation6 + $0x48] sm:$0xff]
        %v790 = vld [vmem:[#allocation6 + $0x50] sm:$0xff]
        %v791 = vld [vmem:[#allocation6 + $0x58] sm:$0xff]
        %v792 = vld [vmem:[#allocation6 + $0x60] sm:$0xff]
        %v793 = vld [vmem:[#allocation6 + $0x68] sm:$0xff]
        %v794 = vld [vmem:[#allocation6 + $0x70] sm:$0xff]
        %v795 = vld [vmem:[#allocation6 + $0x78] sm:$0xff]
        %v796 = vld [vmem:[#allocation6 + $0x80] sm:$0xff]
        %v797 = vld [vmem:[#allocation6 + $0x88] sm:$0xff]
        %v798 = vld [vmem:[#allocation6 + $0x90] sm:$0xff]
        %v799 = vld [vmem:[#allocation6 + $0x98] sm:$0xff]
        %v800 = vld [vmem:[#allocation6 + $0xa0] sm:$0xff]
        %v801 = vld [vmem:[#allocation6 + $0xa8] sm:$0xff]
        %v802 = vld [vmem:[#allocation6 + $0xb0] sm:$0xff]
        %v803 = vld [vmem:[#allocation6 + $0xb8] sm:$0xff]
        %v804 = vld [vmem:[#allocation6 + $0xc0] sm:$0xff]
        %v805 = vld [vmem:[#allocation6 + $0xc8] sm:$0xff]
        %v806 = vld [vmem:[#allocation6 + $0xd0] sm:$0xff]
        %v807 = vld [vmem:[#allocation6 + $0xd8] sm:$0xff]
        %v808 = vld [vmem:[#allocation6 + $0xe0] sm:$0xff]
        %v809 = vld [vmem:[#allocation6 + $0xe8] sm:$0xff]
        %v810 = vld [vmem:[#allocation6 + $0xf0] sm:$0xff]
        %v811 = vld [vmem:[#allocation6 + $0xf8] sm:$0xff]
        %v812 = vld [vmem:[#allocation6 + $0x100] sm:$0xff]
        %v813 = vld [vmem:[#allocation6 + $0x108] sm:$0xff]
        %v814 = vld [vmem:[#allocation6 + $0x110] sm:$0xff]
        %v815 = vld [vmem:[#allocation6 + $0x118] sm:$0xff]
        %v816 = vld [vmem:[#allocation6 + $0x120] sm:$0xff]
        %v817 = vld [vmem:[#allocation6 + $0x128] sm:$0xff]
        %v818 = vld [vmem:[#allocation6 + $0x130] sm:$0xff]
        %v819 = vld [vmem:[#allocation6 + $0x138] sm:$0xff]
        %v820 = vld [vmem:[#allocation6 + $0x140] sm:$0xff]
        %v821 = vld [vmem:[#allocation6 + $0x148] sm:$0xff]
        %v822 = vld [vmem:[#allocation6 + $0x150] sm:$0xff]
        %v823 = vld [vmem:[#allocation6 + $0x158] sm:$0xff]
        %v824 = vld [vmem:[#allocation6 + $0x160] sm:$0xff]
        %v825 = vld [vmem:[#allocation6 + $0x168] sm:$0xff]
        %v826 = vld [vmem:[#allocation6 + $0x170] sm:$0xff]
        %v827 = vld [vmem:[#allocation6 + $0x178] sm:$0xff]
        %v828 = vld [vmem:[#allocation6 + $0x180] sm:$0xff]
        %v829 = vld [vmem:[#allocation6 + $0x188] sm:$0xff]
        %v830 = vld [vmem:[#allocation6 + $0x190] sm:$0xff]
        %v831 = vld [vmem:[#allocation6 + $0x198] sm:$0xff]
        %v832 = vld [vmem:[#allocation6 + $0x1a0] sm:$0xff]
        %v833 = vld [vmem:[#allocation6 + $0x1a8] sm:$0xff]
        %v834 = vld [vmem:[#allocation6 + $0x1b0] sm:$0xff]
        %v835 = vld [vmem:[#allocation6 + $0x1b8] sm:$0xff]
        %v836 = vld [vmem:[#allocation6 + $0x1c0] sm:$0xff]
        %v837 = vld [vmem:[#allocation6 + $0x1c8] sm:$0xff]
        %v838 = vld [vmem:[#allocation6 + $0x1d0] sm:$0xff]
        %v839 = vld [vmem:[#allocation6 + $0x1d8] sm:$0xff]
        %v840 = vld [vmem:[#allocation6 + $0x1e0] sm:$0xff]
        %v841 = vld [vmem:[#allocation6 + $0x1e8] sm:$0xff]
        %v842 = vld [vmem:[#allocation6 + $0x1f0] sm:$0xff]
        %v843 = vld [vmem:[#allocation6 + $0x1f8] sm:$0xff]
        %v844 = vld [vmem:[#allocation2] sm:$0xfe]
        %v845 = vld [vmem:[#allocation2 + $0x8] sm:$0xfe]
        %v846 = vld [vmem:[#allocation2 + $0x20] sm:$0x1]
        %v847 = vld [vmem:[#allocation2 + $0x28] sm:$0x1]
        %s848 = scalar_lea.vmem [#allocation6], 512
        %v849 = vld [vmem:[%s848] sm:$0xff]
        %v850 = vld [vmem:[%s848 + $0x8] sm:$0xff]
        %v851 = vld [vmem:[%s848 + $0x10] sm:$0xff]
        %v852 = vld [vmem:[%s848 + $0x18] sm:$0xff]
        %v853 = vld [vmem:[%s848 + $0x20] sm:$0xff]
        %v854 = vld [vmem:[%s848 + $0x28] sm:$0xff]
        %v855 = vld [vmem:[%s848 + $0x30] sm:$0xff]
        %v856 = vld [vmem:[%s848 + $0x38] sm:$0xff]
        %v857 = vld [vmem:[%s848 + $0x40] sm:$0xff]
        %v858 = vld [vmem:[%s848 + $0x48] sm:$0xff]
        %v859 = vld [vmem:[%s848 + $0x50] sm:$0xff]
        %v860 = vld [vmem:[%s848 + $0x58] sm:$0xff]
        %v861 = vld [vmem:[%s848 + $0x60] sm:$0xff]
        %v862 = vld [vmem:[%s848 + $0x68] sm:$0xff]
        %v863 = vld [vmem:[%s848 + $0x70] sm:$0xff]
        %v864 = vld [vmem:[%s848 + $0x78] sm:$0xff]
        %v865 = vld [vmem:[%s848 + $0x80] sm:$0xff]
        %v866 = vld [vmem:[%s848 + $0x88] sm:$0xff]
        %v867 = vld [vmem:[%s848 + $0x90] sm:$0xff]
        %v868 = vld [vmem:[%s848 + $0x98] sm:$0xff]
        %v869 = vld [vmem:[%s848 + $0xa0] sm:$0xff]
        %v870 = vld [vmem:[%s848 + $0xa8] sm:$0xff]
        %v871 = vld [vmem:[%s848 + $0xb0] sm:$0xff]
        %v872 = vld [vmem:[%s848 + $0xb8] sm:$0xff]
        %v873 = vld [vmem:[%s848 + $0xc0] sm:$0xff]
        %v874 = vld [vmem:[%s848 + $0xc8] sm:$0xff]
        %v875 = vld [vmem:[%s848 + $0xd0] sm:$0xff]
        %v876 = vld [vmem:[%s848 + $0xd8] sm:$0xff]
        %v877 = vld [vmem:[%s848 + $0xe0] sm:$0xff]
        %v878 = vld [vmem:[%s848 + $0xe8] sm:$0xff]
        %v879 = vld [vmem:[%s848 + $0xf0] sm:$0xff]
        %v880 = vld [vmem:[%s848 + $0xf8] sm:$0xff]
        %v881 = vld [vmem:[%s848 + $0x100] sm:$0xff]
        %v882 = vld [vmem:[%s848 + $0x108] sm:$0xff]
        %v883 = vld [vmem:[%s848 + $0x110] sm:$0xff]
        %v884 = vld [vmem:[%s848 + $0x118] sm:$0xff]
        %v885 = vld [vmem:[%s848 + $0x120] sm:$0xff]
        %v886 = vld [vmem:[%s848 + $0x128] sm:$0xff]
        %v887 = vld [vmem:[%s848 + $0x130] sm:$0xff]
        %v888 = vld [vmem:[%s848 + $0x138] sm:$0xff]
        %v889 = vld [vmem:[%s848 + $0x140] sm:$0xff]
        %v890 = vld [vmem:[%s848 + $0x148] sm:$0xff]
        %v891 = vld [vmem:[%s848 + $0x150] sm:$0xff]
        %v892 = vld [vmem:[%s848 + $0x158] sm:$0xff]
        %v893 = vld [vmem:[%s848 + $0x160] sm:$0xff]
        %v894 = vld [vmem:[%s848 + $0x168] sm:$0xff]
        %v895 = vld [vmem:[%s848 + $0x170] sm:$0xff]
        %v896 = vld [vmem:[%s848 + $0x178] sm:$0xff]
        %v897 = vld [vmem:[%s848 + $0x180] sm:$0xff]
        %v898 = vld [vmem:[%s848 + $0x188] sm:$0xff]
        %v899 = vld [vmem:[%s848 + $0x190] sm:$0xff]
        %v900 = vld [vmem:[%s848 + $0x198] sm:$0xff]
        %v901 = vld [vmem:[%s848 + $0x1a0] sm:$0xff]
        %v902 = vld [vmem:[%s848 + $0x1a8] sm:$0xff]
        %v903 = vld [vmem:[%s848 + $0x1b0] sm:$0xff]
        %v904 = vld [vmem:[%s848 + $0x1b8] sm:$0xff]
        %v905 = vld [vmem:[%s848 + $0x1c0] sm:$0xff]
        %v906 = vld [vmem:[%s848 + $0x1c8] sm:$0xff]
        %v907 = vld [vmem:[%s848 + $0x1d0] sm:$0xff]
        %v908 = vld [vmem:[%s848 + $0x1d8] sm:$0xff]
        %v909 = vld [vmem:[%s848 + $0x1e0] sm:$0xff]
        %v910 = vld [vmem:[%s848 + $0x1e8] sm:$0xff]
        %v911 = vld [vmem:[%s848 + $0x1f0] sm:$0xff]
        %v912 = vld [vmem:[%s848 + $0x1f8] sm:$0xff]
        %v919 = vrot.slane %v844, 1
        %v920 = vrot.slane %v778, 1
        %v921 = vsel %vm394, %v919, %v920
        %v922 = vrot.slane %v845, 1
        %v923 = vrot.slane %v779, 1
        %v924 = vsel %vm394, %v922, %v923
        %v925 = vrot.slane %v846, 1
        %v926 = vsel %vm394, %v920, %v925
        %v927 = vrot.slane %v847, 1
        %v928 = vsel %vm394, %v923, %v927
        %933 = vmatprep.subr.mxu0 %v880
        %934 = vmatpush1.msra.mxu0 %v879
        %935 = vmatprep.subr.mxu0 %v878
        %936 = vmatpush1.msra.mxu0 %v877
        %937 = vmatprep.subr.mxu0 %v876
        %938 = vmatpush1.msra.mxu0 %v875
        %939 = vmatprep.subr.mxu0 %v874
        %940 = vmatpush1.msra.mxu0 %v873
        %941 = vmatprep.subr.mxu0 %v872
        %942 = vmatpush1.msra.mxu0 %v871
        %943 = vmatprep.subr.mxu0 %v870
        %944 = vmatpush1.msra.mxu0 %v869
        %945 = vmatprep.subr.mxu0 %v868
        %946 = vmatpush1.msra.mxu0 %v867
        %947 = vmatprep.subr.mxu0 %v866
        %948 = vmatpush1.msra.mxu0 %v865
        %949 = vmatprep.subr.mxu0 %v864
        %950 = vmatpush1.msra.mxu0 %v863
        %951 = vmatprep.subr.mxu0 %v862
        %952 = vmatpush1.msra.mxu0 %v861
        %953 = vmatprep.subr.mxu0 %v860
        %954 = vmatpush1.msra.mxu0 %v859
        %955 = vmatprep.subr.mxu0 %v858
        %956 = vmatpush1.msra.mxu0 %v857
        %957 = vmatprep.subr.mxu0 %v856
        %958 = vmatpush1.msra.mxu0 %v855
        %959 = vmatprep.subr.mxu0 %v854
        %960 = vmatpush1.msra.mxu0 %v853
        %961 = vmatprep.subr.mxu0 %v852
        %962 = vmatpush1.msra.mxu0 %v851
        %963 = vmatprep.subr.mxu0 %v850
        %964 = vmatpush1.msra.mxu0 %v849
        %965 = vmatprep.subr.mxu0 %v912
        %966 = vmatpush2.msra.mxu0 %v911
        %967 = vmatprep.subr.mxu0 %v910
        %968 = vmatpush2.msra.mxu0 %v909
        %969 = vmatprep.subr.mxu0 %v908
        %970 = vmatpush2.msra.mxu0 %v907
        %971 = vmatprep.subr.mxu0 %v906
        %972 = vmatpush2.msra.mxu0 %v905
        %973 = vmatprep.subr.mxu0 %v904
        %974 = vmatpush2.msra.mxu0 %v903
        %975 = vmatprep.subr.mxu0 %v902
        %976 = vmatpush2.msra.mxu0 %v901
        %977 = vmatprep.subr.mxu0 %v900
        %978 = vmatpush2.msra.mxu0 %v899
        %979 = vmatprep.subr.mxu0 %v898
        %980 = vmatpush2.msra.mxu0 %v897
        %981 = vmatprep.subr.mxu0 %v896
        %982 = vmatpush2.msra.mxu0 %v895
        %983 = vmatprep.subr.mxu0 %v894
        %984 = vmatpush2.msra.mxu0 %v893
        %985 = vmatprep.subr.mxu0 %v892
        %986 = vmatpush2.msra.mxu0 %v891
        %987 = vmatprep.subr.mxu0 %v890
        %988 = vmatpush2.msra.mxu0 %v889
        %989 = vmatprep.subr.mxu0 %v888
        %990 = vmatpush2.msra.mxu0 %v887
        %991 = vmatprep.subr.mxu0 %v886
        %992 = vmatpush2.msra.mxu0 %v885
        %993 = vmatprep.subr.mxu0 %v884
        %994 = vmatpush2.msra.mxu0 %v883
        %995 = vmatprep.subr.mxu0 %v882
        %996 = vmatpush2.msra.mxu0 %v881
        %997 = vmatprep.mubr.f32.mxu0 %v924
        %998 = vmatmul.mubr.f32.gmra.mxu0 %v921
        %v999 = vpop.f32.mrf.mxu0
        %v1000 = vadd.f32 0.0, %v999
        %v1001 = vpop.f32.mrf.mxu0
        %v1002 = vadd.f32 0.0, %v1001
        %1003 = vmatprep.mubr.f32.mxu0 %v928
        %1004 = vmatmul.mubr.f32.gmra.mxu0 %v926
        %v1005 = vpop.f32.mrf.mxu0
        %v1006 = vadd.f32 0.0, %v1005
        %v1007 = vpop.f32.mrf.mxu0
        %v1008 = vadd.f32 0.0, %v1007
        %1009 = vdwg.mxu0
        %1010 = vmatprep.subr.mxu0 %v811
        %1011 = vmatpush1.msra.mxu0 %v810
        %1012 = vmatprep.subr.mxu0 %v809
        %1013 = vmatpush1.msra.mxu0 %v808
        %1014 = vmatprep.subr.mxu0 %v807
        %1015 = vmatpush1.msra.mxu0 %v806
        %1016 = vmatprep.subr.mxu0 %v805
        %1017 = vmatpush1.msra.mxu0 %v804
        %1018 = vmatprep.subr.mxu0 %v803
        %1019 = vmatpush1.msra.mxu0 %v802
        %1020 = vmatprep.subr.mxu0 %v801
        %1021 = vmatpush1.msra.mxu0 %v800
        %1022 = vmatprep.subr.mxu0 %v799
        %1023 = vmatpush1.msra.mxu0 %v798
        %1024 = vmatprep.subr.mxu0 %v797
        %1025 = vmatpush1.msra.mxu0 %v796
        %1026 = vmatprep.subr.mxu0 %v795
        %1027 = vmatpush1.msra.mxu0 %v794
        %1028 = vmatprep.subr.mxu0 %v793
        %1029 = vmatpush1.msra.mxu0 %v792
        %1030 = vmatprep.subr.mxu0 %v791
        %1031 = vmatpush1.msra.mxu0 %v790
        %1032 = vmatprep.subr.mxu0 %v789
        %1033 = vmatpush1.msra.mxu0 %v788
        %1034 = vmatprep.subr.mxu0 %v787
        %1035 = vmatpush1.msra.mxu0 %v786
        %1036 = vmatprep.subr.mxu0 %v785
        %1037 = vmatpush1.msra.mxu0 %v784
        %1038 = vmatprep.subr.mxu0 %v783
        %1039 = vmatpush1.msra.mxu0 %v782
        %1040 = vmatprep.subr.mxu0 %v781
        %1041 = vmatpush1.msra.mxu0 %v780
        %1042 = vmatprep.subr.mxu0 %v843
        %1043 = vmatpush2.msra.mxu0 %v842
        %1044 = vmatprep.subr.mxu0 %v841
        %1045 = vmatpush2.msra.mxu0 %v840
        %1046 = vmatprep.subr.mxu0 %v839
        %1047 = vmatpush2.msra.mxu0 %v838
        %1048 = vmatprep.subr.mxu0 %v837
        %1049 = vmatpush2.msra.mxu0 %v836
        %1050 = vmatprep.subr.mxu0 %v835
        %1051 = vmatpush2.msra.mxu0 %v834
        %1052 = vmatprep.subr.mxu0 %v833
        %1053 = vmatpush2.msra.mxu0 %v832
        %1054 = vmatprep.subr.mxu0 %v831
        %1055 = vmatpush2.msra.mxu0 %v830
        %1056 = vmatprep.subr.mxu0 %v829
        %1057 = vmatpush2.msra.mxu0 %v828
        %1058 = vmatprep.subr.mxu0 %v827
        %1059 = vmatpush2.msra.mxu0 %v826
        %1060 = vmatprep.subr.mxu0 %v825
        %1061 = vmatpush2.msra.mxu0 %v824
        %1062 = vmatprep.subr.mxu0 %v823
        %1063 = vmatpush2.msra.mxu0 %v822
        %1064 = vmatprep.subr.mxu0 %v821
        %1065 = vmatpush2.msra.mxu0 %v820
        %1066 = vmatprep.subr.mxu0 %v819
        %1067 = vmatpush2.msra.mxu0 %v818
        %1068 = vmatprep.subr.mxu0 %v817
        %1069 = vmatpush2.msra.mxu0 %v816
        %1070 = vmatprep.subr.mxu0 %v815
        %1071 = vmatpush2.msra.mxu0 %v814
        %1072 = vmatprep.subr.mxu0 %v813
        %1073 = vmatpush2.msra.mxu0 %v812
        %1074 = vmatprep.mubr.f32.mxu0 %v777
        %1075 = vmatmul.mubr.f32.gmra.mxu0 %v776
        %v1076 = vpop.f32.mrf.mxu0
        %v1077 = vadd.f32 %v1000, %v1076
        %v1078 = vpop.f32.mrf.mxu0
        %v1079 = vadd.f32 %v1002, %v1078
        %1080 = vmatprep.mubr.f32.mxu0 %v779
        %1081 = vmatmul.mubr.f32.gmra.mxu0 %v778
        %v1082 = vpop.f32.mrf.mxu0
        %v1083 = vadd.f32 %v1006, %v1082
        %v1084 = vpop.f32.mrf.mxu0
        %v1085 = vadd.f32 %v1008, %v1084
        %1086 = vdwg.mxu0
        %v1087 = vld [vmem:[#allocation2] sm:$0xfc]
        %v1088 = vld [vmem:[#allocation2 + $0x8] sm:$0xfc]
        %v1089 = vld [vmem:[#allocation2 + $0x20] sm:$0x3]
        %v1090 = vld [vmem:[#allocation2 + $0x28] sm:$0x3]
        %s1091 = scalar_lea.vmem [#allocation6], 1024
        %v1092 = vld [vmem:[%s1091] sm:$0xff]
        %v1093 = vld [vmem:[%s1091 + $0x8] sm:$0xff]
        %v1094 = vld [vmem:[%s1091 + $0x10] sm:$0xff]
        %v1095 = vld [vmem:[%s1091 + $0x18] sm:$0xff]
        %v1096 = vld [vmem:[%s1091 + $0x20] sm:$0xff]
        %v1097 = vld [vmem:[%s1091 + $0x28] sm:$0xff]
        %v1098 = vld [vmem:[%s1091 + $0x30] sm:$0xff]
        %v1099 = vld [vmem:[%s1091 + $0x38] sm:$0xff]
        %v1100 = vld [vmem:[%s1091 + $0x40] sm:$0xff]
        %v1101 = vld [vmem:[%s1091 + $0x48] sm:$0xff]
        %v1102 = vld [vmem:[%s1091 + $0x50] sm:$0xff]
        %v1103 = vld [vmem:[%s1091 + $0x58] sm:$0xff]
        %v1104 = vld [vmem:[%s1091 + $0x60] sm:$0xff]
        %v1105 = vld [vmem:[%s1091 + $0x68] sm:$0xff]
        %v1106 = vld [vmem:[%s1091 + $0x70] sm:$0xff]
        %v1107 = vld [vmem:[%s1091 + $0x78] sm:$0xff]
        %v1108 = vld [vmem:[%s1091 + $0x80] sm:$0xff]
        %v1109 = vld [vmem:[%s1091 + $0x88] sm:$0xff]
        %v1110 = vld [vmem:[%s1091 + $0x90] sm:$0xff]
        %v1111 = vld [vmem:[%s1091 + $0x98] sm:$0xff]
        %v1112 = vld [vmem:[%s1091 + $0xa0] sm:$0xff]
        %v1113 = vld [vmem:[%s1091 + $0xa8] sm:$0xff]
        %v1114 = vld [vmem:[%s1091 + $0xb0] sm:$0xff]
        %v1115 = vld [vmem:[%s1091 + $0xb8] sm:$0xff]
        %v1116 = vld [vmem:[%s1091 + $0xc0] sm:$0xff]
        %v1117 = vld [vmem:[%s1091 + $0xc8] sm:$0xff]
        %v1118 = vld [vmem:[%s1091 + $0xd0] sm:$0xff]
        %v1119 = vld [vmem:[%s1091 + $0xd8] sm:$0xff]
        %v1120 = vld [vmem:[%s1091 + $0xe0] sm:$0xff]
        %v1121 = vld [vmem:[%s1091 + $0xe8] sm:$0xff]
        %v1122 = vld [vmem:[%s1091 + $0xf0] sm:$0xff]
        %v1123 = vld [vmem:[%s1091 + $0xf8] sm:$0xff]
        %v1124 = vld [vmem:[%s1091 + $0x100] sm:$0xff]
        %v1125 = vld [vmem:[%s1091 + $0x108] sm:$0xff]
        %v1126 = vld [vmem:[%s1091 + $0x110] sm:$0xff]
        %v1127 = vld [vmem:[%s1091 + $0x118] sm:$0xff]
        %v1128 = vld [vmem:[%s1091 + $0x120] sm:$0xff]
        %v1129 = vld [vmem:[%s1091 + $0x128] sm:$0xff]
        %v1130 = vld [vmem:[%s1091 + $0x130] sm:$0xff]
        %v1131 = vld [vmem:[%s1091 + $0x138] sm:$0xff]
        %v1132 = vld [vmem:[%s1091 + $0x140] sm:$0xff]
        %v1133 = vld [vmem:[%s1091 + $0x148] sm:$0xff]
        %v1134 = vld [vmem:[%s1091 + $0x150] sm:$0xff]
        %v1135 = vld [vmem:[%s1091 + $0x158] sm:$0xff]
        %v1136 = vld [vmem:[%s1091 + $0x160] sm:$0xff]
        %v1137 = vld [vmem:[%s1091 + $0x168] sm:$0xff]
        %v1138 = vld [vmem:[%s1091 + $0x170] sm:$0xff]
        %v1139 = vld [vmem:[%s1091 + $0x178] sm:$0xff]
        %v1140 = vld [vmem:[%s1091 + $0x180] sm:$0xff]
        %v1141 = vld [vmem:[%s1091 + $0x188] sm:$0xff]
        %v1142 = vld [vmem:[%s1091 + $0x190] sm:$0xff]
        %v1143 = vld [vmem:[%s1091 + $0x198] sm:$0xff]
        %v1144 = vld [vmem:[%s1091 + $0x1a0] sm:$0xff]
        %v1145 = vld [vmem:[%s1091 + $0x1a8] sm:$0xff]
        %v1146 = vld [vmem:[%s1091 + $0x1b0] sm:$0xff]
        %v1147 = vld [vmem:[%s1091 + $0x1b8] sm:$0xff]
        %v1148 = vld [vmem:[%s1091 + $0x1c0] sm:$0xff]
        %v1149 = vld [vmem:[%s1091 + $0x1c8] sm:$0xff]
        %v1150 = vld [vmem:[%s1091 + $0x1d0] sm:$0xff]
        %v1151 = vld [vmem:[%s1091 + $0x1d8] sm:$0xff]
        %v1152 = vld [vmem:[%s1091 + $0x1e0] sm:$0xff]
        %v1153 = vld [vmem:[%s1091 + $0x1e8] sm:$0xff]
        %v1154 = vld [vmem:[%s1091 + $0x1f0] sm:$0xff]
        %v1155 = vld [vmem:[%s1091 + $0x1f8] sm:$0xff]
        %v1160 = vrot.slane %v1087, 2
        %v1161 = vrot.slane %v778, 2
        %v1162 = vsel %vm628, %v1160, %v1161
        %v1163 = vrot.slane %v1088, 2
        %v1164 = vrot.slane %v779, 2
        %v1165 = vsel %vm628, %v1163, %v1164
        %v1166 = vrot.slane %v1089, 2
        %v1167 = vsel %vm628, %v1161, %v1166
        %v1168 = vrot.slane %v1090, 2
        %v1169 = vsel %vm628, %v1164, %v1168
        %1174 = vmatprep.subr.mxu0 %v1123
        %1175 = vmatpush1.msra.mxu0 %v1122
        %1176 = vmatprep.subr.mxu0 %v1121
        %1177 = vmatpush1.msra.mxu0 %v1120
        %1178 = vmatprep.subr.mxu0 %v1119
        %1179 = vmatpush1.msra.mxu0 %v1118
        %1180 = vmatprep.subr.mxu0 %v1117
        %1181 = vmatpush1.msra.mxu0 %v1116
        %1182 = vmatprep.subr.mxu0 %v1115
        %1183 = vmatpush1.msra.mxu0 %v1114
        %1184 = vmatprep.subr.mxu0 %v1113
        %1185 = vmatpush1.msra.mxu0 %v1112
        %1186 = vmatprep.subr.mxu0 %v1111
        %1187 = vmatpush1.msra.mxu0 %v1110
        %1188 = vmatprep.subr.mxu0 %v1109
        %1189 = vmatpush1.msra.mxu0 %v1108
        %1190 = vmatprep.subr.mxu0 %v1107
        %1191 = vmatpush1.msra.mxu0 %v1106
        %1192 = vmatprep.subr.mxu0 %v1105
        %1193 = vmatpush1.msra.mxu0 %v1104
        %1194 = vmatprep.subr.mxu0 %v1103
        %1195 = vmatpush1.msra.mxu0 %v1102
        %1196 = vmatprep.subr.mxu0 %v1101
        %1197 = vmatpush1.msra.mxu0 %v1100
        %1198 = vmatprep.subr.mxu0 %v1099
        %1199 = vmatpush1.msra.mxu0 %v1098
        %1200 = vmatprep.subr.mxu0 %v1097
        %1201 = vmatpush1.msra.mxu0 %v1096
        %1202 = vmatprep.subr.mxu0 %v1095
        %1203 = vmatpush1.msra.mxu0 %v1094
        %1204 = vmatprep.subr.mxu0 %v1093
        %1205 = vmatpush1.msra.mxu0 %v1092
        %1206 = vmatprep.subr.mxu0 %v1155
        %1207 = vmatpush2.msra.mxu0 %v1154
        %1208 = vmatprep.subr.mxu0 %v1153
        %1209 = vmatpush2.msra.mxu0 %v1152
        %1210 = vmatprep.subr.mxu0 %v1151
        %1211 = vmatpush2.msra.mxu0 %v1150
        %1212 = vmatprep.subr.mxu0 %v1149
        %1213 = vmatpush2.msra.mxu0 %v1148
        %1214 = vmatprep.subr.mxu0 %v1147
        %1215 = vmatpush2.msra.mxu0 %v1146
        %1216 = vmatprep.subr.mxu0 %v1145
        %1217 = vmatpush2.msra.mxu0 %v1144
        %1218 = vmatprep.subr.mxu0 %v1143
        %1219 = vmatpush2.msra.mxu0 %v1142
        %1220 = vmatprep.subr.mxu0 %v1141
        %1221 = vmatpush2.msra.mxu0 %v1140
        %1222 = vmatprep.subr.mxu0 %v1139
        %1223 = vmatpush2.msra.mxu0 %v1138
        %1224 = vmatprep.subr.mxu0 %v1137
        %1225 = vmatpush2.msra.mxu0 %v1136
        %1226 = vmatprep.subr.mxu0 %v1135
        %1227 = vmatpush2.msra.mxu0 %v1134
        %1228 = vmatprep.subr.mxu0 %v1133
        %1229 = vmatpush2.msra.mxu0 %v1132
        %1230 = vmatprep.subr.mxu0 %v1131
        %1231 = vmatpush2.msra.mxu0 %v1130
        %1232 = vmatprep.subr.mxu0 %v1129
        %1233 = vmatpush2.msra.mxu0 %v1128
        %1234 = vmatprep.subr.mxu0 %v1127
        %1235 = vmatpush2.msra.mxu0 %v1126
        %1236 = vmatprep.subr.mxu0 %v1125
        %1237 = vmatpush2.msra.mxu0 %v1124
        %1238 = vmatprep.mubr.f32.mxu0 %v1165
        %1239 = vmatmul.mubr.f32.gmra.mxu0 %v1162
        %v1240 = vpop.f32.mrf.mxu0
        %v1241 = vadd.f32 0.0, %v1240
        %v1242 = vpop.f32.mrf.mxu0
        %v1243 = vadd.f32 0.0, %v1242
        %1244 = vmatprep.mubr.f32.mxu0 %v1169
        %1245 = vmatmul.mubr.f32.gmra.mxu0 %v1167
        %v1246 = vpop.f32.mrf.mxu0
        %v1247 = vadd.f32 0.0, %v1246
        %v1248 = vpop.f32.mrf.mxu0
        %v1249 = vadd.f32 0.0, %v1248
        %1250 = vdwg.mxu0
        %v1251 = vadd.f32 %v1077, %v1241
        %v1252 = vadd.f32 %v1079, %v1243
        %v1253 = vadd.f32 %v1083, %v1247
        %v1254 = vadd.f32 %v1085, %v1249
        %v1255 = vld [vmem:[%s4] sm:$0x3]
        %v1257 = vlaneseq
        %v1258 = vshrl.u32 %v1257, 7
        %v1259 = vsub.s32 0, %v1258
        %v1260 = vrot.slane %v1255, %v1259
        %v1261 = vlaneseq
        %v1262 = vshrl.u32 %v1261, 7
        %v1263 = vsub.s32 1, %v1262
        %v1264 = vrot.slane %v1255, %v1263
        %v1267 = vadd.f32 %v1251, %v1260
        %v1268 = vadd.f32 %v1252, %v1264
        %v1269 = vadd.f32 %v1253, %v1260
        %v1270 = vadd.f32 %v1254, %v1264
        %v1275 = vrot.slane %v1267, 7
        %v1276 = vrot.slane %v1268, 7
        %v1277 = vrot.slane %v1269, 7
        %v1278 = vsel %vm757, %v1275, %v1277
        %v1279 = vrot.slane %v1270, 7
        %v1280 = vsel %vm757, %v1276, %v1279
        %v1287 = vadd.f32 %v253, %v1275
        %v1288 = vadd.f32 %v254, %v1276
        %v1289 = vadd.f32 %v255, %v1278
        %v1290 = vadd.f32 %v256, %v1280
        %v1291 = vadd.f32 %v257, %v1277
        %v1292 = vadd.f32 %v258, %v1279
        %v1299 = vrot.slane %v1287, 1
        %v1300 = vrot.slane %v1289, 1
        %v1301 = vsel %vm394, %v1299, %v1300
        %v1302 = vrot.slane %v1288, 1
        %v1303 = vrot.slane %v1290, 1
        %v1304 = vsel %vm394, %v1302, %v1303
        %v1305 = vrot.slane %v1291, 1
        %v1306 = vsel %vm394, %v1300, %v1305
        %v1307 = vrot.slane %v1292, 1
        %v1308 = vsel %vm394, %v1303, %v1307
        %1313 = vst [vmem:[%s247] sm:$0xff] %v1301
        %1314 = vst [vmem:[%s247 + $0x8] sm:$0xff] %v1304
        %1315 = vst [vmem:[%s247 + $0x10] sm:$0xff] %v1306
        %1316 = vst [vmem:[%s247 + $0x18] sm:$0xff] %v1308
        %s1317 = sand.u32 %s139, 1
        %s1318 = scalar_lea.sflag [#allocation5], %s1317
        %s1319 = sand.u32 %s139, 1
        %s1320 = smul.addr %s1319, 32
        %s1321 = scalar_lea.vmem [#allocation8], %s1320
        // Predicated region
        $region49: #{tpu_custom_call.1} parent=39 // pred_check
          %p1322 = pneg %p149
        $region50: #{tpu_custom_call.1} parent=39 // pred_check_branch
          %1324 = sbr.rel (%p1322) target = $region52
        $region51: #{tpu_custom_call.1} parent=39 // pred_region
          %s1326 = ssub.s32 512, 512
          %1327 = vsyncadd %s1318, %s1326
          %s1328 = smul.addr %s21, 4
          %s1329 = smul.addr %s1328, 128
          %s1330 = scalar_lea.hbm %s5, %s1329
          %s1331 = sshll.u32 %s1321, 4
          %s1332 = int_to_ptr.vmem [resolvable:$true] %s1331
          %1337 = dma.vmem_to_hbm [thread:$0]  %s1332, 512, %s1330, %s1318, 256, 256, 16
        $region52: #{tpu_custom_call.1} parent=39 // pred_fallthru
          _
      $region40: #{tpu_custom_call.1} parent=5 // pred_fallthru
        _
      %p1338 = scmp.le.s32.totalorder 2, %s16
      // Predicated region
      $region53: #{tpu_custom_call.1} parent=5 // pred_check
        %p1339 = pneg %p1338
      $region54: #{tpu_custom_call.1} parent=5 // pred_check_branch
        %1341 = sbr.rel (%p1339) target = $region56
      $region55: #{tpu_custom_call.1} parent=5 // pred_region
        %s1342 = ssub.s32 %s16, 2
        // Predicated region
        $region57: #{tpu_custom_call.1} parent=55 // pred_check
          %p1343 = pneg %p155
        $region58: #{tpu_custom_call.1} parent=55 // pred_check_branch
          %1345 = sbr.rel (%p1343) target = $region60
        $region59: #{tpu_custom_call.1} parent=55 // pred_region
          %s1346 = sand.u32 %s140, 1
          %s1347 = scalar_lea.sflag [#allocation5], %s1346
          %s1348 = sand.u32 %s140, 1
          %s1349 = smul.addr %s1348, 32
          %s1350 = scalar_lea.vmem [#allocation8], %s1349
          %1351 = dma.done %s1347, 512
        $region60: #{tpu_custom_call.1} parent=55 // pred_fallthru
          _
      $region56: #{tpu_custom_call.1} parent=5 // pred_fallthru
        _
    $region6: #{tpu_custom_call.1} parent=1 // loop_footer
      %s20 = sadd.s32 1, %s16
    $region7: #{tpu_custom_call.1} parent=1 // loop_footer_branch
      %15 = sbr.rel target = $region3
    $region8: #{tpu_custom_call.1} parent=1 // loop_exit
      _
    %1352 = vsyncpa [#allocation4], 1
    %s1353 = scalar_lea.sflag [#allocation4], 1
    %1354 = vsyncpa %s1353, 1
    %1355 = vsyncpa [#allocation7], 1
    %1356 = vsyncpa [#allocation5], 1
    %s1357 = scalar_lea.sflag [#allocation5], 1
    %1358 = vsyncpa %s1357, 1

</llo_original>
